<compile_context>
chip_gen: v7x
topology: tpu7x:2x2x1
jax: 0.10.0
libtpu: 0.0.40
codegen_flags: <defaults>
</compile_context>

<pallas_src>
import jax
import jax.numpy as jnp
from jax.experimental import pallas as pl
from jax.experimental.pallas import tpu as pltpu

EPS = 1e-5  # nn.BatchNorm2d default eps


def _make_kernel(N, H, W, C):
    Hp = H + 2
    WC = W * C
    M = N * H
    inv_cnt = 1.0 / float(N * H * W)

    def kernel(x_ref, w1_ref, w2_ref, pool_ref,
               g1_ref, b1_ref, g2_ref, b2_ref,
               o_ref, pad_ref):

        def conv(w_ref):
            # 3x3 conv as 3 row-tap matmuls; the kx taps and the W-edge zero
            # padding live inside the banded (W*C, W*C) weight matrices.
            acc = None
            for ky in range(3):
                slab = (pad_ref[:, ky:ky + H, :]
                        .reshape(M, WC).astype(jnp.bfloat16))
                part = jnp.dot(slab, w_ref[ky],
                               preferred_element_type=jnp.float32)
                acc = part if acc is None else acc + part
            return acc

        def bn_affine(y, g_ref, b_ref):
            # Training-mode BatchNorm folded into a per-channel affine y*a + c.
            # Reductions run on the (otherwise idle) MXU:
            #   s/ss  : per-lane sums over the N*H rows (ones-row matmul),
            #   pool  : 0/1 matrix that sums lanes of equal channel AND
            #           broadcasts the result back to every pixel slot.
            ones_row = jnp.ones((1, M), jnp.float32)
            s = jnp.dot(ones_row, y, preferred_element_type=jnp.float32)
            ss = jnp.dot(ones_row, y * y, preferred_element_type=jnp.float32)
            pooled = jnp.dot(jnp.concatenate([s, ss], axis=0), pool_ref[...],
                             preferred_element_type=jnp.float32)   # (2, WC)
            mean = pooled[0:1, :] * inv_cnt
            var = pooled[1:2, :] * inv_cnt - mean * mean
            a = g_ref[...] * jax.lax.rsqrt(var + EPS)
            c = b_ref[...] - mean * a
            return a, c

        # ---- stage x with a zero H-halo (1 row top/bottom per image) -------
        # Halo rows are written once; conv2's halo is also zero, so they are
        # reused and only the interior is overwritten between the convs.
        zrow = jnp.zeros((N, 1, WC), jnp.float32)
        pad_ref[:, 0:1, :] = zrow
        pad_ref[:, Hp - 1:Hp, :] = zrow
        pad_ref[:, 1:1 + H, :] = x_ref[...]

        # ---- conv1 -> bn1 -> relu ------------------------------------------
        yc1 = conv(w1_ref)
        a1, c1 = bn_affine(yc1, g1_ref, b1_ref)
        y1 = jnp.maximum(yc1 * a1 + c1, 0.0)

        pad_ref[:, 1:1 + H, :] = y1.reshape(N, H, WC)

        # ---- conv2 -> bn2 -> +residual -> relu (all lane-dense, f32) -------
        yc2 = conv(w2_ref)
        a2, c2 = bn_affine(yc2, g2_ref, b2_ref)
        res = x_ref[...].reshape(M, WC)                    # contiguous f32 residual
        o_ref[...] = jnp.maximum(yc2 * a2 + c2 + res, 0.0)

    return kernel


def _pack_conv3x3(w_oihw, W):
    """(Cout, Cin, 3, 3) OIHW -> (3, W*C, W*C) block-banded bf16 matrices.

    mats[ky][w_in*C + ci, w_out*C + co] = w[co, ci, ky, w_in - w_out + 1]
    (zero outside the +-1 band), so `row_slab_ky @ mats[ky]` applies all three
    kx taps of row tap ky, including the zero padding at the W edges.
    """
    C = w_oihw.shape[0]
    wt = jnp.transpose(w_oihw, (2, 3, 1, 0)).astype(jnp.float32)  # (ky,kx,Ci,Co)
    mats = []
    for ky in range(3):
        m = sum(jnp.kron(jnp.eye(W, k=1 - kx, dtype=jnp.float32), wt[ky, kx])
                for kx in range(3))
        mats.append(m)
    return jnp.stack(mats).astype(jnp.bfloat16)


def basic_block(x_nchw, w1, w2, g1, b1, g2, b2):
    """x_nchw: (N, C, H, W) f32; w1/w2: (C, C, 3, 3) PyTorch OIHW layout."""
    N, C, H, W = x_nchw.shape
    WC = W * C

    # NCHW -> lane-packed rows (N, H, W*C), f32 (kept f32 for the residual).
    x_rows = (jnp.transpose(x_nchw, (0, 2, 3, 1))
              .astype(jnp.float32).reshape(N, H, WC))

    w1m = _pack_conv3x3(w1, W)                               # (3, WC, WC) bf16
    w2m = _pack_conv3x3(w2, W)
    # Channel-pool matrix: pool[i, j] = 1 iff (i % C) == (j % C).
    pool = jnp.kron(jnp.ones((W, W), jnp.float32), jnp.eye(C, dtype=jnp.float32))

    def lanes(v):   # per-channel param -> packed (1, W*C) lane vector
        return jnp.tile(v.astype(jnp.float32).reshape(-1), W).reshape(1, WC)

    vmem = pl.BlockSpec(memory_space=pltpu.MemorySpace.VMEM)
    out_rows = pl.pallas_call(
        _make_kernel(N, H, W, C),
        out_shape=jax.ShapeDtypeStruct((N * H, WC), jnp.float32),  # lane-dense
        in_specs=[vmem] * 8,
        out_specs=vmem,
        scratch_shapes=[
            pltpu.VMEM((N, H + 2, WC), jnp.float32),   # shared padded staging
        ],
    )(x_rows, w1m, w2m, pool, lanes(g1), lanes(b1), lanes(g2), lanes(b2))

    out = out_rows.reshape(N, H, W, C)
    return jnp.transpose(out, (0, 3, 1, 2))                       # -> NCHW


def reference(x_nchw, w1, w2, g1, b1, g2, b2):
    """Pure-JAX f32 reference matching PyTorch BasicBlock.forward semantics."""
    def conv(x, w):
        return jax.lax.conv_general_dilated(
            x, w, window_strides=(1, 1), padding=((1, 1), (1, 1)),
            dimension_numbers=("NCHW", "OIHW", "NCHW"))

    def bn(y, g, b):
        mean = jnp.mean(y, axis=(0, 2, 3), keepdims=True)
        var = jnp.mean((y - mean) ** 2, axis=(0, 2, 3), keepdims=True)
        yhat = (y - mean) * jax.lax.rsqrt(var + EPS)
        return yhat * g.reshape(1, -1, 1, 1) + b.reshape(1, -1, 1, 1)

    out = jnp.maximum(bn(conv(x_nchw, w1), g1, b1), 0.0)
    out = jnp.maximum(bn(conv(out, w2), g2, b2) + x_nchw, 0.0)
    return out


if __name__ == "__main__":
    # inplanes == planes, stride == 1 (residual path); W*C = 128 lanes.
    N, C, H, W = 2, 8, 16, 16

    key = jax.random.PRNGKey(0)
    kx_, k1, k2, kg1, kb1, kg2, kb2 = jax.random.split(key, 7)
    x = jax.random.normal(kx_, (N, C, H, W), jnp.float32)
    # Conv weights in PyTorch OIHW layout, bias=False.
    w1 = jax.random.normal(k1, (C, C, 3, 3), jnp.float32) * (1.0 / (3.0 * C ** 0.5))
    w2 = jax.random.normal(k2, (C, C, 3, 3), jnp.float32) * (1.0 / (3.0 * C ** 0.5))
    # BatchNorm affine params (perturbed from init to exercise the affine path).
    g1 = 1.0 + 0.1 * jax.random.normal(kg1, (C,), jnp.float32)
    b1 = 0.1 * jax.random.normal(kb1, (C,), jnp.float32)
    g2 = 1.0 + 0.1 * jax.random.normal(kg2, (C,), jnp.float32)
    b2 = 0.1 * jax.random.normal(kb2, (C,), jnp.float32)

    out = jax.block_until_ready(basic_block(x, w1, w2, g1, b1, g2, b2))
    ref = jax.block_until_ready(reference(x, w1, w2, g1, b1, g2, b2))

    assert out.shape == (N, C, H, W), out.shape
    # Conv and BN-stat matmuls use bf16 operands (f32 accumulation) -> loosened
    # tolerance vs the pure-f32 reference.
    max_err = float(jnp.max(jnp.abs(out - ref)))
    assert jnp.allclose(out, ref, atol=5e-2, rtol=5e-2), max_err
    print("KERNEL_OK")
</pallas_src>

<mosaic_0001>
module attributes {stable_mosaic.version = 11 : i64} {
  func.func @kernel(%arg0: memref<2x16x128xf32, #tpu.memory_space<vmem>>, %arg1: memref<3x128x128xbf16, #tpu.memory_space<vmem>>, %arg2: memref<3x128x128xbf16, #tpu.memory_space<vmem>>, %arg3: memref<128x128xf32, #tpu.memory_space<vmem>>, %arg4: memref<1x128xf32, #tpu.memory_space<vmem>>, %arg5: memref<1x128xf32, #tpu.memory_space<vmem>>, %arg6: memref<1x128xf32, #tpu.memory_space<vmem>>, %arg7: memref<1x128xf32, #tpu.memory_space<vmem>>, %arg8: memref<32x128xf32, #tpu.memory_space<vmem>>, %arg9: memref<2x18x128xf32, #tpu.memory_space<vmem>>) attributes {dimension_semantics = [], scalar_prefetch = 0 : i64, scratch_operands = 1 : i64, tpu.core_type = #tpu.core_type<tc>} {
    %cst = arith.constant 0.000000e+00 : f32
    %0 = vector.broadcast %cst : f32 to vector<2x1x128xf32>
    %c0 = arith.constant 0 : index
    %c0_0 = arith.constant 0 : index
    %c0_1 = arith.constant 0 : index
    %1 = vector.load %arg9[%c0, %c0_0, %c0_1] : memref<2x18x128xf32, #tpu.memory_space<vmem>>, vector<2x1x128xf32>
    tpu.vector_store %arg9[%c0, %c0_0, %c0_1], %0 {strides = array<i32>} : memref<2x18x128xf32, #tpu.memory_space<vmem>>, vector<2x1x128xf32>,
    %c0_2 = arith.constant 0 : index
    %c17 = arith.constant 17 : index
    %c0_3 = arith.constant 0 : index
    %2 = vector.load %arg9[%c0_2, %c17, %c0_3] : memref<2x18x128xf32, #tpu.memory_space<vmem>>, vector<2x1x128xf32>
    tpu.vector_store %arg9[%c0_2, %c17, %c0_3], %0 {strides = array<i32>} : memref<2x18x128xf32, #tpu.memory_space<vmem>>, vector<2x1x128xf32>,
    %c0_4 = arith.constant 0 : index
    %c0_5 = arith.constant 0 : index
    %c0_6 = arith.constant 0 : index
    %3 = vector.load %arg0[%c0_4, %c0_5, %c0_6] : memref<2x16x128xf32, #tpu.memory_space<vmem>>, vector<2x16x128xf32>
    %c0_7 = arith.constant 0 : index
    %c1 = arith.constant 1 : index
    %c0_8 = arith.constant 0 : index
    %4 = vector.load %arg9[%c0_7, %c1, %c0_8] : memref<2x18x128xf32, #tpu.memory_space<vmem>>, vector<2x16x128xf32>
    tpu.vector_store %arg9[%c0_7, %c1, %c0_8], %3 {strides = array<i32>} : memref<2x18x128xf32, #tpu.memory_space<vmem>>, vector<2x16x128xf32>,
    %c0_9 = arith.constant 0 : index
    %c0_10 = arith.constant 0 : index
    %c0_11 = arith.constant 0 : index
    %5 = vector.load %arg9[%c0_9, %c0_10, %c0_11] : memref<2x18x128xf32, #tpu.memory_space<vmem>>, vector<2x16x128xf32>
    %6 = vector.shape_cast %5 : vector<2x16x128xf32> to vector<32x128xf32>
    %7 = arith.truncf %6 : vector<32x128xf32> to vector<32x128xbf16>
    %c0_12 = arith.constant 0 : index
    %c0_13 = arith.constant 0 : index
    %c0_14 = arith.constant 0 : index
    %8 = vector.load %arg1[%c0_12, %c0_13, %c0_14] : memref<3x128x128xbf16, #tpu.memory_space<vmem>>, vector<1x128x128xbf16>
    %9 = vector.shape_cast %8 : vector<1x128x128xbf16> to vector<128x128xbf16>
    %cst_15 = arith.constant dense<0.000000e+00> : vector<32x128xf32>
    %10 = tpu.matmul %7, %9, %cst_15 {dimension_numbers = #tpu.dot_dimension_numbers<[1], [0], [0], [1], [0, 0, 1, 1], [], []>} : vector<32x128xbf16>, vector<128x128xbf16>, vector<32x128xf32> -> vector<32x128xf32>
    %c0_16 = arith.constant 0 : index
    %c1_17 = arith.constant 1 : index
    %c0_18 = arith.constant 0 : index
    %11 = vector.load %arg9[%c0_16, %c1_17, %c0_18] : memref<2x18x128xf32, #tpu.memory_space<vmem>>, vector<2x16x128xf32>
    %12 = vector.shape_cast %11 : vector<2x16x128xf32> to vector<32x128xf32>
    %13 = arith.truncf %12 : vector<32x128xf32> to vector<32x128xbf16>
    %c1_19 = arith.constant 1 : index
    %c0_20 = arith.constant 0 : index
    %c0_21 = arith.constant 0 : index
    %14 = vector.load %arg1[%c1_19, %c0_20, %c0_21] : memref<3x128x128xbf16, #tpu.memory_space<vmem>>, vector<1x128x128xbf16>
    %15 = vector.shape_cast %14 : vector<1x128x128xbf16> to vector<128x128xbf16>
    %cst_22 = arith.constant dense<0.000000e+00> : vector<32x128xf32>
    %16 = tpu.matmul %13, %15, %cst_22 {dimension_numbers = #tpu.dot_dimension_numbers<[1], [0], [0], [1], [0, 0, 1, 1], [], []>} : vector<32x128xbf16>, vector<128x128xbf16>, vector<32x128xf32> -> vector<32x128xf32>
    %17 = arith.addf %10, %16 : vector<32x128xf32>
    %c0_23 = arith.constant 0 : index
    %c2 = arith.constant 2 : index
    %c0_24 = arith.constant 0 : index
    %18 = vector.load %arg9[%c0_23, %c2, %c0_24] : memref<2x18x128xf32, #tpu.memory_space<vmem>>, vector<2x16x128xf32>
    %19 = vector.shape_cast %18 : vector<2x16x128xf32> to vector<32x128xf32>
    %20 = arith.truncf %19 : vector<32x128xf32> to vector<32x128xbf16>
    %c2_25 = arith.constant 2 : index
    %c0_26 = arith.constant 0 : index
    %c0_27 = arith.constant 0 : index
    %21 = vector.load %arg1[%c2_25, %c0_26, %c0_27] : memref<3x128x128xbf16, #tpu.memory_space<vmem>>, vector<1x128x128xbf16>
    %22 = vector.shape_cast %21 : vector<1x128x128xbf16> to vector<128x128xbf16>
    %cst_28 = arith.constant dense<0.000000e+00> : vector<32x128xf32>
    %23 = tpu.matmul %20, %22, %cst_28 {dimension_numbers = #tpu.dot_dimension_numbers<[1], [0], [0], [1], [0, 0, 1, 1], [], []>} : vector<32x128xbf16>, vector<128x128xbf16>, vector<32x128xf32> -> vector<32x128xf32>
    %24 = arith.addf %17, %23 : vector<32x128xf32>
    %cst_29 = arith.constant 1.000000e+00 : f32
    %25 = vector.broadcast %cst_29 : f32 to vector<1x32xf32>
    %cst_30 = arith.constant dense<0.000000e+00> : vector<1x128xf32>
    %26 = tpu.matmul %25, %24, %cst_30 {dimension_numbers = #tpu.dot_dimension_numbers<[1], [0], [0], [1], [0, 0, 1, 1], [], []>} : vector<1x32xf32>, vector<32x128xf32>, vector<1x128xf32> -> vector<1x128xf32>
    %27 = arith.mulf %24, %24 : vector<32x128xf32>
    %cst_31 = arith.constant dense<0.000000e+00> : vector<1x128xf32>
    %28 = tpu.matmul %25, %27, %cst_31 {dimension_numbers = #tpu.dot_dimension_numbers<[1], [0], [0], [1], [0, 0, 1, 1], [], []>} : vector<1x32xf32>, vector<32x128xf32>, vector<1x128xf32> -> vector<1x128xf32>
    %29 = tpu.concatenate %26, %28 in 0 : vector<1x128xf32>, vector<1x128xf32> -> vector<2x128xf32>
    %c0_32 = arith.constant 0 : index
    %c0_33 = arith.constant 0 : index
    %30 = vector.load %arg3[%c0_32, %c0_33] : memref<128x128xf32, #tpu.memory_space<vmem>>, vector<128x128xf32>
    %cst_34 = arith.constant dense<0.000000e+00> : vector<2x128xf32>
    %31 = tpu.matmul %29, %30, %cst_34 {dimension_numbers = #tpu.dot_dimension_numbers<[1], [0], [0], [1], [0, 0, 1, 1], [], []>} : vector<2x128xf32>, vector<128x128xf32>, vector<2x128xf32> -> vector<2x128xf32>
    %32 = vector.extract_strided_slice %31 {offsets = [0, 0], sizes = [1, 128], strides = [1, 1]} : vector<2x128xf32> to vector<1x128xf32>
    %cst_35 = arith.constant 0.001953125 : f32
    %33 = vector.broadcast %cst_35 : f32 to vector<1x128xf32>
    %34 = arith.mulf %32, %33 : vector<1x128xf32>
    %35 = vector.extract_strided_slice %31 {offsets = [1, 0], sizes = [1, 128], strides = [1, 1]} : vector<2x128xf32> to vector<1x128xf32>
    %cst_36 = arith.constant 0.001953125 : f32
    %36 = vector.broadcast %cst_36 : f32 to vector<1x128xf32>
    %37 = arith.mulf %35, %36 : vector<1x128xf32>
    %38 = arith.mulf %34, %34 : vector<1x128xf32>
    %39 = arith.subf %37, %38 : vector<1x128xf32>
    %c0_37 = arith.constant 0 : index
    %c0_38 = arith.constant 0 : index
    %40 = vector.load %arg4[%c0_37, %c0_38] : memref<1x128xf32, #tpu.memory_space<vmem>>, vector<1x128xf32>
    %cst_39 = arith.constant 9.99999974E-6 : f32
    %41 = vector.broadcast %cst_39 : f32 to vector<1x128xf32>
    %42 = arith.addf %39, %41 : vector<1x128xf32>
    %43 = math.rsqrt %42 : vector<1x128xf32>
    %44 = arith.mulf %40, %43 : vector<1x128xf32>
    %c0_40 = arith.constant 0 : index
    %c0_41 = arith.constant 0 : index
    %45 = vector.load %arg5[%c0_40, %c0_41] : memref<1x128xf32, #tpu.memory_space<vmem>>, vector<1x128xf32>
    %46 = arith.mulf %34, %44 : vector<1x128xf32>
    %47 = arith.subf %45, %46 : vector<1x128xf32>
    %48 = vector.broadcast %44 : vector<1x128xf32> to vector<32x128xf32>
    %49 = arith.mulf %24, %48 : vector<32x128xf32>
    %50 = vector.broadcast %47 : vector<1x128xf32> to vector<32x128xf32>
    %51 = arith.addf %49, %50 : vector<32x128xf32>
    %cst_42 = arith.constant 0.000000e+00 : f32
    %52 = vector.broadcast %cst_42 : f32 to vector<32x128xf32>
    %53 = arith.maximumf %51, %52 : vector<32x128xf32>
    %54 = vector.shape_cast %53 : vector<32x128xf32> to vector<2x16x128xf32>
    %c0_43 = arith.constant 0 : index
    %c1_44 = arith.constant 1 : index
    %c0_45 = arith.constant 0 : index
    %55 = vector.load %arg9[%c0_43, %c1_44, %c0_45] : memref<2x18x128xf32, #tpu.memory_space<vmem>>, vector<2x16x128xf32>
    tpu.vector_store %arg9[%c0_43, %c1_44, %c0_45], %54 {strides = array<i32>} : memref<2x18x128xf32, #tpu.memory_space<vmem>>, vector<2x16x128xf32>,
    %c0_46 = arith.constant 0 : index
    %c0_47 = arith.constant 0 : index
    %c0_48 = arith.constant 0 : index
    %56 = vector.load %arg9[%c0_46, %c0_47, %c0_48] : memref<2x18x128xf32, #tpu.memory_space<vmem>>, vector<2x16x128xf32>
    %57 = vector.shape_cast %56 : vector<2x16x128xf32> to vector<32x128xf32>
    %58 = arith.truncf %57 : vector<32x128xf32> to vector<32x128xbf16>
    %c0_49 = arith.constant 0 : index
    %c0_50 = arith.constant 0 : index
    %c0_51 = arith.constant 0 : index
    %59 = vector.load %arg2[%c0_49, %c0_50, %c0_51] : memref<3x128x128xbf16, #tpu.memory_space<vmem>>, vector<1x128x128xbf16>
    %60 = vector.shape_cast %59 : vector<1x128x128xbf16> to vector<128x128xbf16>
    %cst_52 = arith.constant dense<0.000000e+00> : vector<32x128xf32>
    %61 = tpu.matmul %58, %60, %cst_52 {dimension_numbers = #tpu.dot_dimension_numbers<[1], [0], [0], [1], [0, 0, 1, 1], [], []>} : vector<32x128xbf16>, vector<128x128xbf16>, vector<32x128xf32> -> vector<32x128xf32>
    %c0_53 = arith.constant 0 : index
    %c1_54 = arith.constant 1 : index
    %c0_55 = arith.constant 0 : index
    %62 = vector.load %arg9[%c0_53, %c1_54, %c0_55] : memref<2x18x128xf32, #tpu.memory_space<vmem>>, vector<2x16x128xf32>
    %63 = vector.shape_cast %62 : vector<2x16x128xf32> to vector<32x128xf32>
    %64 = arith.truncf %63 : vector<32x128xf32> to vector<32x128xbf16>
    %c1_56 = arith.constant 1 : index
    %c0_57 = arith.constant 0 : index
    %c0_58 = arith.constant 0 : index
    %65 = vector.load %arg2[%c1_56, %c0_57, %c0_58] : memref<3x128x128xbf16, #tpu.memory_space<vmem>>, vector<1x128x128xbf16>
    %66 = vector.shape_cast %65 : vector<1x128x128xbf16> to vector<128x128xbf16>
    %cst_59 = arith.constant dense<0.000000e+00> : vector<32x128xf32>
    %67 = tpu.matmul %64, %66, %cst_59 {dimension_numbers = #tpu.dot_dimension_numbers<[1], [0], [0], [1], [0, 0, 1, 1], [], []>} : vector<32x128xbf16>, vector<128x128xbf16>, vector<32x128xf32> -> vector<32x128xf32>
    %68 = arith.addf %61, %67 : vector<32x128xf32>
    %c0_60 = arith.constant 0 : index
    %c2_61 = arith.constant 2 : index
    %c0_62 = arith.constant 0 : index
    %69 = vector.load %arg9[%c0_60, %c2_61, %c0_62] : memref<2x18x128xf32, #tpu.memory_space<vmem>>, vector<2x16x128xf32>
    %70 = vector.shape_cast %69 : vector<2x16x128xf32> to vector<32x128xf32>
    %71 = arith.truncf %70 : vector<32x128xf32> to vector<32x128xbf16>
    %c2_63 = arith.constant 2 : index
    %c0_64 = arith.constant 0 : index
    %c0_65 = arith.constant 0 : index
    %72 = vector.load %arg2[%c2_63, %c0_64, %c0_65] : memref<3x128x128xbf16, #tpu.memory_space<vmem>>, vector<1x128x128xbf16>
    %73 = vector.shape_cast %72 : vector<1x128x128xbf16> to vector<128x128xbf16>
    %cst_66 = arith.constant dense<0.000000e+00> : vector<32x128xf32>
    %74 = tpu.matmul %71, %73, %cst_66 {dimension_numbers = #tpu.dot_dimension_numbers<[1], [0], [0], [1], [0, 0, 1, 1], [], []>} : vector<32x128xbf16>, vector<128x128xbf16>, vector<32x128xf32> -> vector<32x128xf32>
    %75 = arith.addf %68, %74 : vector<32x128xf32>
    %cst_67 = arith.constant 1.000000e+00 : f32
    %76 = vector.broadcast %cst_67 : f32 to vector<1x32xf32>
    %cst_68 = arith.constant dense<0.000000e+00> : vector<1x128xf32>
    %77 = tpu.matmul %76, %75, %cst_68 {dimension_numbers = #tpu.dot_dimension_numbers<[1], [0], [0], [1], [0, 0, 1, 1], [], []>} : vector<1x32xf32>, vector<32x128xf32>, vector<1x128xf32> -> vector<1x128xf32>
    %78 = arith.mulf %75, %75 : vector<32x128xf32>
    %cst_69 = arith.constant dense<0.000000e+00> : vector<1x128xf32>
    %79 = tpu.matmul %76, %78, %cst_69 {dimension_numbers = #tpu.dot_dimension_numbers<[1], [0], [0], [1], [0, 0, 1, 1], [], []>} : vector<1x32xf32>, vector<32x128xf32>, vector<1x128xf32> -> vector<1x128xf32>
    %80 = tpu.concatenate %77, %79 in 0 : vector<1x128xf32>, vector<1x128xf32> -> vector<2x128xf32>
    %c0_70 = arith.constant 0 : index
    %c0_71 = arith.constant 0 : index
    %81 = vector.load %arg3[%c0_70, %c0_71] : memref<128x128xf32, #tpu.memory_space<vmem>>, vector<128x128xf32>
    %cst_72 = arith.constant dense<0.000000e+00> : vector<2x128xf32>
    %82 = tpu.matmul %80, %81, %cst_72 {dimension_numbers = #tpu.dot_dimension_numbers<[1], [0], [0], [1], [0, 0, 1, 1], [], []>} : vector<2x128xf32>, vector<128x128xf32>, vector<2x128xf32> -> vector<2x128xf32>
    %83 = vector.extract_strided_slice %82 {offsets = [0, 0], sizes = [1, 128], strides = [1, 1]} : vector<2x128xf32> to vector<1x128xf32>
    %cst_73 = arith.constant 0.001953125 : f32
    %84 = vector.broadcast %cst_73 : f32 to vector<1x128xf32>
    %85 = arith.mulf %83, %84 : vector<1x128xf32>
    %86 = vector.extract_strided_slice %82 {offsets = [1, 0], sizes = [1, 128], strides = [1, 1]} : vector<2x128xf32> to vector<1x128xf32>
    %cst_74 = arith.constant 0.001953125 : f32
    %87 = vector.broadcast %cst_74 : f32 to vector<1x128xf32>
    %88 = arith.mulf %86, %87 : vector<1x128xf32>
    %89 = arith.mulf %85, %85 : vector<1x128xf32>
    %90 = arith.subf %88, %89 : vector<1x128xf32>
    %c0_75 = arith.constant 0 : index
    %c0_76 = arith.constant 0 : index
    %91 = vector.load %arg6[%c0_75, %c0_76] : memref<1x128xf32, #tpu.memory_space<vmem>>, vector<1x128xf32>
    %cst_77 = arith.constant 9.99999974E-6 : f32
    %92 = vector.broadcast %cst_77 : f32 to vector<1x128xf32>
    %93 = arith.addf %90, %92 : vector<1x128xf32>
    %94 = math.rsqrt %93 : vector<1x128xf32>
    %95 = arith.mulf %91, %94 : vector<1x128xf32>
    %c0_78 = arith.constant 0 : index
    %c0_79 = arith.constant 0 : index
    %96 = vector.load %arg7[%c0_78, %c0_79] : memref<1x128xf32, #tpu.memory_space<vmem>>, vector<1x128xf32>
    %97 = arith.mulf %85, %95 : vector<1x128xf32>
    %98 = arith.subf %96, %97 : vector<1x128xf32>
    %c0_80 = arith.constant 0 : index
    %c0_81 = arith.constant 0 : index
    %c0_82 = arith.constant 0 : index
    %99 = vector.load %arg0[%c0_80, %c0_81, %c0_82] : memref<2x16x128xf32, #tpu.memory_space<vmem>>, vector<2x16x128xf32>
    %100 = vector.shape_cast %99 : vector<2x16x128xf32> to vector<32x128xf32>
    %101 = vector.broadcast %95 : vector<1x128xf32> to vector<32x128xf32>
    %102 = arith.mulf %75, %101 : vector<32x128xf32>
    %103 = vector.broadcast %98 : vector<1x128xf32> to vector<32x128xf32>
    %104 = arith.addf %102, %103 : vector<32x128xf32>
    %105 = arith.addf %104, %100 : vector<32x128xf32>
    %cst_83 = arith.constant 0.000000e+00 : f32
    %106 = vector.broadcast %cst_83 : f32 to vector<32x128xf32>
    %107 = arith.maximumf %105, %106 : vector<32x128xf32>
    %c0_84 = arith.constant 0 : index
    %c0_85 = arith.constant 0 : index
    %108 = vector.load %arg8[%c0_84, %c0_85] : memref<32x128xf32, #tpu.memory_space<vmem>>, vector<32x128xf32>
    tpu.vector_store %arg8[%c0_84, %c0_85], %107 {strides = array<i32>} : memref<32x128xf32, #tpu.memory_space<vmem>>, vector<32x128xf32>,
    return
  }
}

</mosaic_0001>

<llo_original>
// kernel: tpu_custom_call.1
$region0: #{tpu_custom_call.1}
  #allocation0 [shape = 'u32[]', space=smem, size = 0x4, offset = 0x4, fixed_abs, tag = 'smem constant byte address 0x4 - core index']
  #allocation1 [shape = 'u32[144,128]{1,0:T(1,128)}', space=vmem, size = 0x12000, scoped, tag = 'internal scratch']
  #allocation2 [shape = 'f32[2,18,128]{2,1,0:T(8,128)}', space=vmem, size = 0x6000, scoped, tag = 'scratch operand']
  %s0 = inlined_call_operand.hbm [shape: f32[2,16,128], index: 0, kind: input, shape index: {}]
  %s1 = inlined_call_operand.hbm [shape: bf16[3,128,128], index: 1, kind: input, shape index: {}]
  %s2 = inlined_call_operand.hbm [shape: bf16[3,128,128], index: 2, kind: input, shape index: {}]
  %s3 = inlined_call_operand.hbm [shape: f32[128,128], index: 3, kind: input, shape index: {}]
  %s4 = inlined_call_operand.vmem [shape: f32[1,128], index: 4, kind: input, shape index: {}]
  %s5 = inlined_call_operand.vmem [shape: f32[1,128], index: 5, kind: input, shape index: {}]
  %s6 = inlined_call_operand.vmem [shape: f32[1,128], index: 6, kind: input, shape index: {}]
  %s7 = inlined_call_operand.vmem [shape: f32[1,128], index: 7, kind: input, shape index: {}]
  %s8 = inlined_call_operand.hbm [shape: f32[32,128], index: 8, kind: output, shape index: {}]
  %s9 = sld [smem:[#allocation0]]
  $region58: #{tpu_custom_call.1} parent=0
    _
  %s11 = ssub.s32 1, %s9
  %s12 = scalar_select 0, %s11, %s9
  $region1: #{tpu_custom_call.1} parent=0
    #allocation3 [shape = 'u8[16384]{0}', space=vmem, size = 0x4000, scoped, tag = 'input window, operand 0, single buffered']
    #allocation4 [shape = 's32[1]{0}', space=sflag, size = 0x4, scoped, tag = 'scoped memory for tpu_custom_call.1']
    #allocation5 [shape = 's32[1]{0}', space=sflag, size = 0x4, scoped, tag = 'scoped memory for tpu_custom_call.1']
    #allocation6 [shape = 'u8[98304]{0}', space=vmem, size = 0x18000, scoped, tag = 'input window, operand 1, single buffered']
    #allocation7 [shape = 's32[1]{0}', space=sflag, size = 0x4, scoped, tag = 'scoped memory for tpu_custom_call.1']
    #allocation8 [shape = 'u8[98304]{0}', space=vmem, size = 0x18000, scoped, tag = 'input window, operand 2, single buffered']
    #allocation9 [shape = 'u8[65536]{0}', space=vmem, size = 0x10000, scoped, tag = 'input window, operand 3, single buffered']
    #allocation10 [shape = 's32[1]{0}', space=sflag, size = 0x4, scoped, tag = 'scoped memory for tpu_custom_call.1']
    #allocation11 [shape = 'u8[16384]{0}', space=vmem, size = 0x4000, scoped, tag = 'output window, operand 0, single buffered']
    %13 = vsyncpa [#allocation4], 0
    %14 = vsyncpa [#allocation7], 0
    %15 = vsyncpa [#allocation10], 0
    %16 = vsyncpa [#allocation5], 0
    // Predicated region
    $region2: #{tpu_custom_call.1} parent=1 // pred_check
      _
    $region3: #{tpu_custom_call.1} parent=1 // pred_check_branch
      %18 = sbr.rel (0) target = $region5
    $region4: #{tpu_custom_call.1} parent=1 // pred_region
      %s20 = ssub.s32 512, 512
      %21 = vsyncadd [#allocation4], %s20
      %s22 = sshll.u32 [#allocation3], 4
      %s23 = int_to_ptr.vmem [resolvable:$true] %s22
      %28 = dma.hbm_to_vmem [thread:$0]  %s0, 512, %s23, [#allocation4], 128, 128, 8
    $region5: #{tpu_custom_call.1} parent=1 // pred_fallthru
      _
    // Predicated region
    $region6: #{tpu_custom_call.1} parent=1 // pred_check
      _
    $region7: #{tpu_custom_call.1} parent=1 // pred_check_branch
      %30 = sbr.rel (0) target = $region9
    $region8: #{tpu_custom_call.1} parent=1 // pred_region
      %s32 = ssub.s32 3072, 3072
      %33 = vsyncadd [#allocation7], %s32
      %s34 = sshll.u32 [#allocation6], 4
      %s35 = int_to_ptr.vmem [resolvable:$true] %s34
      %40 = dma.hbm_to_vmem [thread:$0]  %s1, 3072, %s35, [#allocation7], 64, 64, 4
    $region9: #{tpu_custom_call.1} parent=1 // pred_fallthru
      _
    // Predicated region
    $region10: #{tpu_custom_call.1} parent=1 // pred_check
      _
    $region11: #{tpu_custom_call.1} parent=1 // pred_check_branch
      %42 = sbr.rel (0) target = $region13
    $region12: #{tpu_custom_call.1} parent=1 // pred_region
      %s44 = ssub.s32 3072, 3072
      %45 = vsyncadd [#allocation7], %s44
      %s46 = sshll.u32 [#allocation8], 4
      %s47 = int_to_ptr.vmem [resolvable:$true] %s46
      %52 = dma.hbm_to_vmem [thread:$0]  %s2, 3072, %s47, [#allocation7], 64, 64, 4
    $region13: #{tpu_custom_call.1} parent=1 // pred_fallthru
      _
    // Predicated region
    $region14: #{tpu_custom_call.1} parent=1 // pred_check
      _
    $region15: #{tpu_custom_call.1} parent=1 // pred_check_branch
      %54 = sbr.rel (0) target = $region17
    $region16: #{tpu_custom_call.1} parent=1 // pred_region
      %s56 = ssub.s32 2048, 2048
      %57 = vsyncadd [#allocation10], %s56
      %s58 = sshll.u32 [#allocation9], 4
      %s59 = int_to_ptr.vmem [resolvable:$true] %s58
      %64 = dma.hbm_to_vmem [thread:$0]  %s3, 2048, %s59, [#allocation10], 128, 128, 8
    $region17: #{tpu_custom_call.1} parent=1 // pred_fallthru
      _
    // Predicated region
    $region18: #{tpu_custom_call.1} parent=1 // pred_check
      _
    $region19: #{tpu_custom_call.1} parent=1 // pred_check_branch
      %66 = sbr.rel (0) target = $region21
    $region20: #{tpu_custom_call.1} parent=1 // pred_region
      _
    $region21: #{tpu_custom_call.1} parent=1 // pred_fallthru
      _
    // Predicated region
    $region22: #{tpu_custom_call.1} parent=1 // pred_check
      _
    $region23: #{tpu_custom_call.1} parent=1 // pred_check_branch
      %68 = sbr.rel (0) target = $region25
    $region24: #{tpu_custom_call.1} parent=1 // pred_region
      _
    $region25: #{tpu_custom_call.1} parent=1 // pred_fallthru
      _
    // Predicated region
    $region26: #{tpu_custom_call.1} parent=1 // pred_check
      _
    $region27: #{tpu_custom_call.1} parent=1 // pred_check_branch
      %70 = sbr.rel (0) target = $region29
    $region28: #{tpu_custom_call.1} parent=1 // pred_region
      _
    $region29: #{tpu_custom_call.1} parent=1 // pred_fallthru
      _
    // Predicated region
    $region30: #{tpu_custom_call.1} parent=1 // pred_check
      _
    $region31: #{tpu_custom_call.1} parent=1 // pred_check_branch
      %72 = sbr.rel (0) target = $region33
    $region32: #{tpu_custom_call.1} parent=1 // pred_region
      _
    $region33: #{tpu_custom_call.1} parent=1 // pred_fallthru
      _
    // Predicated region
    $region34: #{tpu_custom_call.1} parent=1 // pred_check
      _
    $region35: #{tpu_custom_call.1} parent=1 // pred_check_branch
      %74 = sbr.rel (0) target = $region37
    $region36: #{tpu_custom_call.1} parent=1 // pred_region
      %75 = dma.done [#allocation4], 512
    $region37: #{tpu_custom_call.1} parent=1 // pred_fallthru
      _
    // Predicated region
    $region38: #{tpu_custom_call.1} parent=1 // pred_check
      _
    $region39: #{tpu_custom_call.1} parent=1 // pred_check_branch
      %77 = sbr.rel (0) target = $region41
    $region40: #{tpu_custom_call.1} parent=1 // pred_region
      %78 = dma.done [#allocation7], 3072
    $region41: #{tpu_custom_call.1} parent=1 // pred_fallthru
      _
    // Predicated region
    $region42: #{tpu_custom_call.1} parent=1 // pred_check
      _
    $region43: #{tpu_custom_call.1} parent=1 // pred_check_branch
      %80 = sbr.rel (0) target = $region45
    $region44: #{tpu_custom_call.1} parent=1 // pred_region
      %81 = dma.done [#allocation7], 3072
    $region45: #{tpu_custom_call.1} parent=1 // pred_fallthru
      _
    // Predicated region
    $region46: #{tpu_custom_call.1} parent=1 // pred_check
      _
    $region47: #{tpu_custom_call.1} parent=1 // pred_check_branch
      %83 = sbr.rel (0) target = $region49
    $region48: #{tpu_custom_call.1} parent=1 // pred_region
      %84 = dma.done [#allocation10], 2048
    $region49: #{tpu_custom_call.1} parent=1 // pred_fallthru
      _
    %86 = vst [vmem:[#allocation2] sm:$0x1] 0.0
    %87 = vst [vmem:[#allocation2 + $0x18] sm:$0x1] 0.0
    %88 = vst [vmem:[#allocation2 + $0x11] sm:$0x1] 0.0
    %89 = vst [vmem:[#allocation2 + $0x29] sm:$0x1] 0.0
    %v90 = vld [vmem:[#allocation3] sm:$0xff]
    %v91 = vld [vmem:[#allocation3 + $0x8] sm:$0xff]
    %v92 = vld [vmem:[#allocation3 + $0x10] sm:$0xff]
    %v93 = vld [vmem:[#allocation3 + $0x18] sm:$0xff]
    %94 = vst [vmem:[#allocation2 + $0x1] sm:$0xff] %v90
    %95 = vst [vmem:[#allocation2 + $0x9] sm:$0xff] %v91
    %96 = vst [vmem:[#allocation2 + $0x19] sm:$0xff] %v92
    %97 = vst [vmem:[#allocation2 + $0x21] sm:$0xff] %v93
    %v98 = vld [vmem:[#allocation2] sm:$0xff]
    %v99 = vld [vmem:[#allocation2 + $0x8] sm:$0xff]
    %v100 = vld [vmem:[#allocation2 + $0x18] sm:$0xff]
    %v101 = vld [vmem:[#allocation2 + $0x20] sm:$0xff]
    %v102 = vpack.c.bf16 %v99, %v98
    %v103 = vpack.c.bf16 %v101, %v100
    %v104 = vld [vmem:[#allocation6] sm:$0xf]
    %v105 = vld [vmem:[#allocation6 + $0x4] sm:$0xf]
    %v106 = vld [vmem:[#allocation6 + $0x8] sm:$0xf]
    %v107 = vld [vmem:[#allocation6 + $0xc] sm:$0xf]
    %v108 = vld [vmem:[#allocation6 + $0x10] sm:$0xf]
    %v109 = vld [vmem:[#allocation6 + $0x14] sm:$0xf]
    %v110 = vld [vmem:[#allocation6 + $0x18] sm:$0xf]
    %v111 = vld [vmem:[#allocation6 + $0x1c] sm:$0xf]
    %v112 = vld [vmem:[#allocation6 + $0x20] sm:$0xf]
    %v113 = vld [vmem:[#allocation6 + $0x24] sm:$0xf]
    %v114 = vld [vmem:[#allocation6 + $0x28] sm:$0xf]
    %v115 = vld [vmem:[#allocation6 + $0x2c] sm:$0xf]
    %v116 = vld [vmem:[#allocation6 + $0x30] sm:$0xf]
    %v117 = vld [vmem:[#allocation6 + $0x34] sm:$0xf]
    %v118 = vld [vmem:[#allocation6 + $0x38] sm:$0xf]
    %v119 = vld [vmem:[#allocation6 + $0x3c] sm:$0xf]
    %v120 = vld [vmem:[#allocation2 + $0x1] sm:$0xff]
    %v121 = vld [vmem:[#allocation2 + $0x9] sm:$0xff]
    %v122 = vld [vmem:[#allocation2 + $0x19] sm:$0xff]
    %v123 = vld [vmem:[#allocation2 + $0x21] sm:$0xff]
    %v124 = vpack.c.bf16 %v121, %v120
    %v125 = vpack.c.bf16 %v123, %v122
    %s126 = scalar_lea.vmem [#allocation6], 64
    %v127 = vld [vmem:[%s126] sm:$0xf]
    %v128 = vld [vmem:[%s126 + $0x4] sm:$0xf]
    %v129 = vld [vmem:[%s126 + $0x8] sm:$0xf]
    %v130 = vld [vmem:[%s126 + $0xc] sm:$0xf]
    %v131 = vld [vmem:[%s126 + $0x10] sm:$0xf]
    %v132 = vld [vmem:[%s126 + $0x14] sm:$0xf]
    %v133 = vld [vmem:[%s126 + $0x18] sm:$0xf]
    %v134 = vld [vmem:[%s126 + $0x1c] sm:$0xf]
    %v135 = vld [vmem:[%s126 + $0x20] sm:$0xf]
    %v136 = vld [vmem:[%s126 + $0x24] sm:$0xf]
    %v137 = vld [vmem:[%s126 + $0x28] sm:$0xf]
    %v138 = vld [vmem:[%s126 + $0x2c] sm:$0xf]
    %v139 = vld [vmem:[%s126 + $0x30] sm:$0xf]
    %v140 = vld [vmem:[%s126 + $0x34] sm:$0xf]
    %v141 = vld [vmem:[%s126 + $0x38] sm:$0xf]
    %v142 = vld [vmem:[%s126 + $0x3c] sm:$0xf]
    %v159 = vunpack.c.l.b16 %v127
    %v160 = vunpack.c.l.b16 %v128
    %v161 = vunpack.c.l.b16 %v129
    %v162 = vunpack.c.l.b16 %v130
    %v163 = vunpack.c.l.b16 %v131
    %v164 = vunpack.c.l.b16 %v132
    %v165 = vunpack.c.l.b16 %v133
    %v166 = vunpack.c.l.b16 %v134
    %v167 = vunpack.c.l.b16 %v135
    %v168 = vunpack.c.l.b16 %v136
    %v169 = vunpack.c.l.b16 %v137
    %v170 = vunpack.c.l.b16 %v138
    %v171 = vunpack.c.l.b16 %v139
    %v172 = vunpack.c.l.b16 %v140
    %v173 = vunpack.c.l.b16 %v141
    %v174 = vunpack.c.l.b16 %v142
    %v175 = vpack.c.b16 %v160, %v159
    %v176 = vpack.c.b16 %v162, %v161
    %v177 = vpack.c.b16 %v164, %v163
    %v178 = vpack.c.b16 %v166, %v165
    %v179 = vpack.c.b16 %v168, %v167
    %v180 = vpack.c.b16 %v170, %v169
    %v181 = vpack.c.b16 %v172, %v171
    %v182 = vpack.c.b16 %v174, %v173
    %191 = vmatprep.subr.bf16.mxu0 0
    %192 = vmatpush1.bf16.msra.mxu0 %v175
    %193 = vmatprep.subr.bf16.mxu0 0
    %194 = vmatpush1.bf16.msra.mxu0 %v176
    %195 = vmatprep.subr.bf16.mxu0 0
    %196 = vmatpush1.bf16.msra.mxu0 %v177
    %197 = vmatprep.subr.bf16.mxu0 0
    %198 = vmatpush1.bf16.msra.mxu0 %v178
    %199 = vmatprep.subr.bf16.mxu0 0
    %200 = vmatpush1.bf16.msra.mxu0 %v179
    %201 = vmatprep.subr.bf16.mxu0 0
    %202 = vmatpush1.bf16.msra.mxu0 %v180
    %203 = vmatprep.subr.bf16.mxu0 0
    %204 = vmatpush1.bf16.msra.mxu0 %v181
    %205 = vmatprep.subr.bf16.mxu0 0
    %206 = vmatpush1.bf16.msra.mxu0 %v182
    %207 = vmatprep.subr.bf16.mxu0 0
    %208 = vmatpush1.bf16.msra.mxu0 0
    %209 = vmatprep.subr.bf16.mxu0 0
    %210 = vmatpush1.bf16.msra.mxu0 0
    %211 = vmatprep.subr.bf16.mxu0 0
    %212 = vmatpush1.bf16.msra.mxu0 0
    %213 = vmatprep.subr.bf16.mxu0 0
    %214 = vmatpush1.bf16.msra.mxu0 0
    %215 = vmatprep.subr.bf16.mxu0 0
    %216 = vmatpush1.bf16.msra.mxu0 0
    %217 = vmatprep.subr.bf16.mxu0 0
    %218 = vmatpush1.bf16.msra.mxu0 0
    %219 = vmatprep.subr.bf16.mxu0 0
    %220 = vmatpush1.bf16.msra.mxu0 0
    %221 = vmatprep.subr.bf16.mxu0 0
    %222 = vmatpush1.bf16.msra.mxu0 0
    %223 = vmatprep.mubr.bf16.mxu0 0
    %224 = vmatmul.mubr.bf16.gmra.mrb[0].mxu0 %v124
    %v225 = vpop.f32.mrb[0].mxu0
    %v226 = vadd.f32 0.0, %v225
    %v227 = vpop.f32.mrb[0].mxu0
    %v228 = vpop.f32.mrb[0].mxu0
    %v229 = vadd.f32 0.0, %v228
    %v230 = vpop.f32.mrb[0].mxu0
    %231 = vmatprep.mubr.bf16.mxu0 0
    %232 = vmatmul.mubr.bf16.gmra.mrb[0].mxu0 %v125
    %v233 = vpop.f32.mrb[0].mxu0
    %v234 = vadd.f32 0.0, %v233
    %v235 = vpop.f32.mrb[0].mxu0
    %v236 = vpop.f32.mrb[0].mxu0
    %v237 = vadd.f32 0.0, %v236
    %v238 = vpop.f32.mrb[0].mxu0
    %239 = vdwg.mxu0
    %v256 = vunpack.c.l.b16 %v104
    %v257 = vunpack.c.l.b16 %v105
    %v258 = vunpack.c.l.b16 %v106
    %v259 = vunpack.c.l.b16 %v107
    %v260 = vunpack.c.l.b16 %v108
    %v261 = vunpack.c.l.b16 %v109
    %v262 = vunpack.c.l.b16 %v110
    %v263 = vunpack.c.l.b16 %v111
    %v264 = vunpack.c.l.b16 %v112
    %v265 = vunpack.c.l.b16 %v113
    %v266 = vunpack.c.l.b16 %v114
    %v267 = vunpack.c.l.b16 %v115
    %v268 = vunpack.c.l.b16 %v116
    %v269 = vunpack.c.l.b16 %v117
    %v270 = vunpack.c.l.b16 %v118
    %v271 = vunpack.c.l.b16 %v119
    %v272 = vpack.c.b16 %v257, %v256
    %v273 = vpack.c.b16 %v259, %v258
    %v274 = vpack.c.b16 %v261, %v260
    %v275 = vpack.c.b16 %v263, %v262
    %v276 = vpack.c.b16 %v265, %v264
    %v277 = vpack.c.b16 %v267, %v266
    %v278 = vpack.c.b16 %v269, %v268
    %v279 = vpack.c.b16 %v271, %v270
    %288 = vmatprep.subr.bf16.mxu0 0
    %289 = vmatpush1.bf16.msra.mxu0 %v272
    %290 = vmatprep.subr.bf16.mxu0 0
    %291 = vmatpush1.bf16.msra.mxu0 %v273
    %292 = vmatprep.subr.bf16.mxu0 0
    %293 = vmatpush1.bf16.msra.mxu0 %v274
    %294 = vmatprep.subr.bf16.mxu0 0
    %295 = vmatpush1.bf16.msra.mxu0 %v275
    %296 = vmatprep.subr.bf16.mxu0 0
    %297 = vmatpush1.bf16.msra.mxu0 %v276
    %298 = vmatprep.subr.bf16.mxu0 0
    %299 = vmatpush1.bf16.msra.mxu0 %v277
    %300 = vmatprep.subr.bf16.mxu0 0
    %301 = vmatpush1.bf16.msra.mxu0 %v278
    %302 = vmatprep.subr.bf16.mxu0 0
    %303 = vmatpush1.bf16.msra.mxu0 %v279
    %304 = vmatprep.subr.bf16.mxu0 0
    %305 = vmatpush1.bf16.msra.mxu0 0
    %306 = vmatprep.subr.bf16.mxu0 0
    %307 = vmatpush1.bf16.msra.mxu0 0
    %308 = vmatprep.subr.bf16.mxu0 0
    %309 = vmatpush1.bf16.msra.mxu0 0
    %310 = vmatprep.subr.bf16.mxu0 0
    %311 = vmatpush1.bf16.msra.mxu0 0
    %312 = vmatprep.subr.bf16.mxu0 0
    %313 = vmatpush1.bf16.msra.mxu0 0
    %314 = vmatprep.subr.bf16.mxu0 0
    %315 = vmatpush1.bf16.msra.mxu0 0
    %316 = vmatprep.subr.bf16.mxu0 0
    %317 = vmatpush1.bf16.msra.mxu0 0
    %318 = vmatprep.subr.bf16.mxu0 0
    %319 = vmatpush1.bf16.msra.mxu0 0
    %320 = vmatprep.mubr.bf16.mxu0 0
    %321 = vmatmul.mubr.bf16.gmra.mrb[0].mxu0 %v102
    %v322 = vpop.f32.mrb[0].mxu0
    %v323 = vadd.f32 %v226, %v322
    %v324 = vpop.f32.mrb[0].mxu0
    %v325 = vpop.f32.mrb[0].mxu0
    %v326 = vadd.f32 %v229, %v325
    %v327 = vpop.f32.mrb[0].mxu0
    %328 = vmatprep.mubr.bf16.mxu0 0
    %329 = vmatmul.mubr.bf16.gmra.mrb[0].mxu0 %v103
    %v330 = vpop.f32.mrb[0].mxu0
    %v331 = vadd.f32 %v234, %v330
    %v332 = vpop.f32.mrb[0].mxu0
    %v333 = vpop.f32.mrb[0].mxu0
    %v334 = vadd.f32 %v237, %v333
    %v335 = vpop.f32.mrb[0].mxu0
    %336 = vdwg.mxu0
    %v337 = vld [vmem:[#allocation2 + $0x2] sm:$0xff]
    %v338 = vld [vmem:[#allocation2 + $0xa] sm:$0xff]
    %v339 = vld [vmem:[#allocation2 + $0x1a] sm:$0xff]
    %v340 = vld [vmem:[#allocation2 + $0x22] sm:$0xff]
    %v341 = vpack.c.bf16 %v338, %v337
    %v342 = vpack.c.bf16 %v340, %v339
    %s343 = scalar_lea.vmem [#allocation6], 128
    %v344 = vld [vmem:[%s343] sm:$0xf]
    %v345 = vld [vmem:[%s343 + $0x4] sm:$0xf]
    %v346 = vld [vmem:[%s343 + $0x8] sm:$0xf]
    %v347 = vld [vmem:[%s343 + $0xc] sm:$0xf]
    %v348 = vld [vmem:[%s343 + $0x10] sm:$0xf]
    %v349 = vld [vmem:[%s343 + $0x14] sm:$0xf]
    %v350 = vld [vmem:[%s343 + $0x18] sm:$0xf]
    %v351 = vld [vmem:[%s343 + $0x1c] sm:$0xf]
    %v352 = vld [vmem:[%s343 + $0x20] sm:$0xf]
    %v353 = vld [vmem:[%s343 + $0x24] sm:$0xf]
    %v354 = vld [vmem:[%s343 + $0x28] sm:$0xf]
    %v355 = vld [vmem:[%s343 + $0x2c] sm:$0xf]
    %v356 = vld [vmem:[%s343 + $0x30] sm:$0xf]
    %v357 = vld [vmem:[%s343 + $0x34] sm:$0xf]
    %v358 = vld [vmem:[%s343 + $0x38] sm:$0xf]
    %v359 = vld [vmem:[%s343 + $0x3c] sm:$0xf]
    %v376 = vunpack.c.l.b16 %v344
    %v377 = vunpack.c.l.b16 %v345
    %v378 = vunpack.c.l.b16 %v346
    %v379 = vunpack.c.l.b16 %v347
    %v380 = vunpack.c.l.b16 %v348
    %v381 = vunpack.c.l.b16 %v349
    %v382 = vunpack.c.l.b16 %v350
    %v383 = vunpack.c.l.b16 %v351
    %v384 = vunpack.c.l.b16 %v352
    %v385 = vunpack.c.l.b16 %v353
    %v386 = vunpack.c.l.b16 %v354
    %v387 = vunpack.c.l.b16 %v355
    %v388 = vunpack.c.l.b16 %v356
    %v389 = vunpack.c.l.b16 %v357
    %v390 = vunpack.c.l.b16 %v358
    %v391 = vunpack.c.l.b16 %v359
    %v392 = vpack.c.b16 %v377, %v376
    %v393 = vpack.c.b16 %v379, %v378
    %v394 = vpack.c.b16 %v381, %v380
    %v395 = vpack.c.b16 %v383, %v382
    %v396 = vpack.c.b16 %v385, %v384
    %v397 = vpack.c.b16 %v387, %v386
    %v398 = vpack.c.b16 %v389, %v388
    %v399 = vpack.c.b16 %v391, %v390
    %408 = vmatprep.subr.bf16.mxu0 0
    %409 = vmatpush1.bf16.msra.mxu0 %v392
    %410 = vmatprep.subr.bf16.mxu0 0
    %411 = vmatpush1.bf16.msra.mxu0 %v393
    %412 = vmatprep.subr.bf16.mxu0 0
    %413 = vmatpush1.bf16.msra.mxu0 %v394
    %414 = vmatprep.subr.bf16.mxu0 0
    %415 = vmatpush1.bf16.msra.mxu0 %v395
    %416 = vmatprep.subr.bf16.mxu0 0
    %417 = vmatpush1.bf16.msra.mxu0 %v396
    %418 = vmatprep.subr.bf16.mxu0 0
    %419 = vmatpush1.bf16.msra.mxu0 %v397
    %420 = vmatprep.subr.bf16.mxu0 0
    %421 = vmatpush1.bf16.msra.mxu0 %v398
    %422 = vmatprep.subr.bf16.mxu0 0
    %423 = vmatpush1.bf16.msra.mxu0 %v399
    %424 = vmatprep.subr.bf16.mxu0 0
    %425 = vmatpush1.bf16.msra.mxu0 0
    %426 = vmatprep.subr.bf16.mxu0 0
    %427 = vmatpush1.bf16.msra.mxu0 0
    %428 = vmatprep.subr.bf16.mxu0 0
    %429 = vmatpush1.bf16.msra.mxu0 0
    %430 = vmatprep.subr.bf16.mxu0 0
    %431 = vmatpush1.bf16.msra.mxu0 0
    %432 = vmatprep.subr.bf16.mxu0 0
    %433 = vmatpush1.bf16.msra.mxu0 0
    %434 = vmatprep.subr.bf16.mxu0 0
    %435 = vmatpush1.bf16.msra.mxu0 0
    %436 = vmatprep.subr.bf16.mxu0 0
    %437 = vmatpush1.bf16.msra.mxu0 0
    %438 = vmatprep.subr.bf16.mxu0 0
    %439 = vmatpush1.bf16.msra.mxu0 0
    %440 = vmatprep.mubr.bf16.mxu0 0
    %441 = vmatmul.mubr.bf16.gmra.mrb[0].mxu0 %v341
    %v442 = vpop.f32.mrb[0].mxu0
    %v443 = vadd.f32 0.0, %v442
    %v444 = vpop.f32.mrb[0].mxu0
    %v445 = vpop.f32.mrb[0].mxu0
    %v446 = vadd.f32 0.0, %v445
    %v447 = vpop.f32.mrb[0].mxu0
    %448 = vmatprep.mubr.bf16.mxu0 0
    %449 = vmatmul.mubr.bf16.gmra.mrb[0].mxu0 %v342
    %v450 = vpop.f32.mrb[0].mxu0
    %v451 = vadd.f32 0.0, %v450
    %v452 = vpop.f32.mrb[0].mxu0
    %v453 = vpop.f32.mrb[0].mxu0
    %v454 = vadd.f32 0.0, %v453
    %v455 = vpop.f32.mrb[0].mxu0
    %456 = vdwg.mxu0
    %v457 = vadd.f32 %v323, %v443
    %v458 = vadd.f32 %v326, %v446
    %v459 = vadd.f32 %v331, %v451
    %v460 = vadd.f32 %v334, %v454
    %vm461 = vcmask 261120
    %v463 = vsel %vm461, 1.0, 0
    %465 = vmatprep.subr.mxu0 0.0
    %466 = vmatpush1.msra.mxu0 %v457
    %467 = vmatprep.subr.mxu0 0.0
    %468 = vmatpush1.msra.mxu0 %v458
    %469 = vmatprep.subr.mxu0 0.0
    %470 = vmatpush1.msra.mxu0 %v459
    %471 = vmatprep.subr.mxu0 0.0
    %472 = vmatpush1.msra.mxu0 %v460
    %473 = vmatprep.subr.mxu0 0.0
    %474 = vmatpush1.msra.mxu0 0.0
    %475 = vmatprep.subr.mxu0 0.0
    %476 = vmatpush1.msra.mxu0 0.0
    %477 = vmatprep.subr.mxu0 0.0
    %478 = vmatpush1.msra.mxu0 0.0
    %479 = vmatprep.subr.mxu0 0.0
    %480 = vmatpush1.msra.mxu0 0.0
    %481 = vmatprep.subr.mxu0 0.0
    %482 = vmatpush1.msra.mxu0 0.0
    %483 = vmatprep.subr.mxu0 0.0
    %484 = vmatpush1.msra.mxu0 0.0
    %485 = vmatprep.subr.mxu0 0.0
    %486 = vmatpush1.msra.mxu0 0.0
    %487 = vmatprep.subr.mxu0 0.0
    %488 = vmatpush1.msra.mxu0 0.0
    %489 = vmatprep.subr.mxu0 0.0
    %490 = vmatpush1.msra.mxu0 0.0
    %491 = vmatprep.subr.mxu0 0.0
    %492 = vmatpush1.msra.mxu0 0.0
    %493 = vmatprep.subr.mxu0 0.0
    %494 = vmatpush1.msra.mxu0 0.0
    %495 = vmatprep.subr.mxu0 0.0
    %496 = vmatpush1.msra.mxu0 0.0
    %497 = vmatprep.subr.mxu0 0.0
    %498 = vmatpush1.msra.mxu0 0.0
    %499 = vmatprep.subr.mxu0 0.0
    %500 = vmatpush1.msra.mxu0 0.0
    %501 = vmatprep.subr.mxu0 0.0
    %502 = vmatpush1.msra.mxu0 0.0
    %503 = vmatprep.subr.mxu0 0.0
    %504 = vmatpush1.msra.mxu0 0.0
    %505 = vmatprep.subr.mxu0 0.0
    %506 = vmatpush1.msra.mxu0 0.0
    %507 = vmatprep.subr.mxu0 0.0
    %508 = vmatpush1.msra.mxu0 0.0
    %509 = vmatprep.subr.mxu0 0.0
    %510 = vmatpush1.msra.mxu0 0.0
    %511 = vmatprep.subr.mxu0 0.0
    %512 = vmatpush1.msra.mxu0 0.0
    %513 = vmatprep.subr.mxu0 0.0
    %514 = vmatpush1.msra.mxu0 0.0
    %515 = vmatprep.subr.mxu0 0.0
    %516 = vmatpush1.msra.mxu0 0.0
    %517 = vmatprep.subr.mxu0 0.0
    %518 = vmatpush1.msra.mxu0 0.0
    %519 = vmatprep.subr.mxu0 0.0
    %520 = vmatpush1.msra.mxu0 0.0
    %521 = vmatprep.subr.mxu0 0.0
    %522 = vmatpush1.msra.mxu0 0.0
    %523 = vmatprep.subr.mxu0 0.0
    %524 = vmatpush1.msra.mxu0 0.0
    %525 = vmatprep.subr.mxu0 0.0
    %526 = vmatpush1.msra.mxu0 0.0
    %527 = vmatprep.subr.mxu0 0.0
    %528 = vmatpush1.msra.mxu0 0.0
    %529 = vmatprep.mubr.f32.mxu0 0.0
    %530 = vmatmul.mubr.f32.gmra.mrb[0].mxu0 %v463
    %v531 = vpop.f32.mrb[0].mxu0
    %v532 = vadd.f32 0.0, %v531
    %v533 = vpop.f32.mrb[0].mxu0
    %534 = vdwg.mxu0
    %v535 = vmul.f32 %v457, %v457
    %v536 = vmul.f32 %v458, %v458
    %v537 = vmul.f32 %v459, %v459
    %v538 = vmul.f32 %v460, %v460
    %539 = vmatprep.subr.mxu0 0.0
    %540 = vmatpush1.msra.mxu0 %v535
    %541 = vmatprep.subr.mxu0 0.0
    %542 = vmatpush1.msra.mxu0 %v536
    %543 = vmatprep.subr.mxu0 0.0
    %544 = vmatpush1.msra.mxu0 %v537
    %545 = vmatprep.subr.mxu0 0.0
    %546 = vmatpush1.msra.mxu0 %v538
    %547 = vmatprep.subr.mxu0 0.0
    %548 = vmatpush1.msra.mxu0 0.0
    %549 = vmatprep.subr.mxu0 0.0
    %550 = vmatpush1.msra.mxu0 0.0
    %551 = vmatprep.subr.mxu0 0.0
    %552 = vmatpush1.msra.mxu0 0.0
    %553 = vmatprep.subr.mxu0 0.0
    %554 = vmatpush1.msra.mxu0 0.0
    %555 = vmatprep.subr.mxu0 0.0
    %556 = vmatpush1.msra.mxu0 0.0
    %557 = vmatprep.subr.mxu0 0.0
    %558 = vmatpush1.msra.mxu0 0.0
    %559 = vmatprep.subr.mxu0 0.0
    %560 = vmatpush1.msra.mxu0 0.0
    %561 = vmatprep.subr.mxu0 0.0
    %562 = vmatpush1.msra.mxu0 0.0
    %563 = vmatprep.subr.mxu0 0.0
    %564 = vmatpush1.msra.mxu0 0.0
    %565 = vmatprep.subr.mxu0 0.0
    %566 = vmatpush1.msra.mxu0 0.0
    %567 = vmatprep.subr.mxu0 0.0
    %568 = vmatpush1.msra.mxu0 0.0
    %569 = vmatprep.subr.mxu0 0.0
    %570 = vmatpush1.msra.mxu0 0.0
    %571 = vmatprep.subr.mxu0 0.0
    %572 = vmatpush1.msra.mxu0 0.0
    %573 = vmatprep.subr.mxu0 0.0
    %574 = vmatpush1.msra.mxu0 0.0
    %575 = vmatprep.subr.mxu0 0.0
    %576 = vmatpush1.msra.mxu0 0.0
    %577 = vmatprep.subr.mxu0 0.0
    %578 = vmatpush1.msra.mxu0 0.0
    %579 = vmatprep.subr.mxu0 0.0
    %580 = vmatpush1.msra.mxu0 0.0
    %581 = vmatprep.subr.mxu0 0.0
    %582 = vmatpush1.msra.mxu0 0.0
    %583 = vmatprep.subr.mxu0 0.0
    %584 = vmatpush1.msra.mxu0 0.0
    %585 = vmatprep.subr.mxu0 0.0
    %586 = vmatpush1.msra.mxu0 0.0
    %587 = vmatprep.subr.mxu0 0.0
    %588 = vmatpush1.msra.mxu0 0.0
    %589 = vmatprep.subr.mxu0 0.0
    %590 = vmatpush1.msra.mxu0 0.0
    %591 = vmatprep.subr.mxu0 0.0
    %592 = vmatpush1.msra.mxu0 0.0
    %593 = vmatprep.subr.mxu0 0.0
    %594 = vmatpush1.msra.mxu0 0.0
    %595 = vmatprep.subr.mxu0 0.0
    %596 = vmatpush1.msra.mxu0 0.0
    %597 = vmatprep.subr.mxu0 0.0
    %598 = vmatpush1.msra.mxu0 0.0
    %599 = vmatprep.subr.mxu0 0.0
    %600 = vmatpush1.msra.mxu0 0.0
    %601 = vmatprep.subr.mxu0 0.0
    %602 = vmatpush1.msra.mxu0 0.0
    %603 = vmatprep.mubr.f32.mxu0 0.0
    %604 = vmatmul.mubr.f32.gmra.mrb[0].mxu0 %v463
    %v605 = vpop.f32.mrb[0].mxu0
    %v606 = vadd.f32 0.0, %v605
    %v607 = vpop.f32.mrb[0].mxu0
    %608 = vdwg.mxu0
    %v610 = vrot.slane %v606, 7
    %vm612 = vcmask 1040384
    %v613 = vsel %vm612, %v532, %v610
    %v614 = vld [vmem:[#allocation9] sm:$0xff]
    %v615 = vld [vmem:[#allocation9 + $0x8] sm:$0xff]
    %v616 = vld [vmem:[#allocation9 + $0x10] sm:$0xff]
    %v617 = vld [vmem:[#allocation9 + $0x18] sm:$0xff]
    %v618 = vld [vmem:[#allocation9 + $0x20] sm:$0xff]
    %v619 = vld [vmem:[#allocation9 + $0x28] sm:$0xff]
    %v620 = vld [vmem:[#allocation9 + $0x30] sm:$0xff]
    %v621 = vld [vmem:[#allocation9 + $0x38] sm:$0xff]
    %v622 = vld [vmem:[#allocation9 + $0x40] sm:$0xff]
    %v623 = vld [vmem:[#allocation9 + $0x48] sm:$0xff]
    %v624 = vld [vmem:[#allocation9 + $0x50] sm:$0xff]
    %v625 = vld [vmem:[#allocation9 + $0x58] sm:$0xff]
    %v626 = vld [vmem:[#allocation9 + $0x60] sm:$0xff]
    %v627 = vld [vmem:[#allocation9 + $0x68] sm:$0xff]
    %v628 = vld [vmem:[#allocation9 + $0x70] sm:$0xff]
    %v629 = vld [vmem:[#allocation9 + $0x78] sm:$0xff]
    %630 = vmatprep.subr.mxu0 0.0
    %631 = vmatpush1.msra.mxu0 %v614
    %632 = vmatprep.subr.mxu0 0.0
    %633 = vmatpush1.msra.mxu0 %v615
    %634 = vmatprep.subr.mxu0 0.0
    %635 = vmatpush1.msra.mxu0 %v616
    %636 = vmatprep.subr.mxu0 0.0
    %637 = vmatpush1.msra.mxu0 %v617
    %638 = vmatprep.subr.mxu0 0.0
    %639 = vmatpush1.msra.mxu0 %v618
    %640 = vmatprep.subr.mxu0 0.0
    %641 = vmatpush1.msra.mxu0 %v619
    %642 = vmatprep.subr.mxu0 0.0
    %643 = vmatpush1.msra.mxu0 %v620
    %644 = vmatprep.subr.mxu0 0.0
    %645 = vmatpush1.msra.mxu0 %v621
    %646 = vmatprep.subr.mxu0 0.0
    %647 = vmatpush1.msra.mxu0 %v622
    %648 = vmatprep.subr.mxu0 0.0
    %649 = vmatpush1.msra.mxu0 %v623
    %650 = vmatprep.subr.mxu0 0.0
    %651 = vmatpush1.msra.mxu0 %v624
    %652 = vmatprep.subr.mxu0 0.0
    %653 = vmatpush1.msra.mxu0 %v625
    %654 = vmatprep.subr.mxu0 0.0
    %655 = vmatpush1.msra.mxu0 %v626
    %656 = vmatprep.subr.mxu0 0.0
    %657 = vmatpush1.msra.mxu0 %v627
    %658 = vmatprep.subr.mxu0 0.0
    %659 = vmatpush1.msra.mxu0 %v628
    %660 = vmatprep.subr.mxu0 0.0
    %661 = vmatpush1.msra.mxu0 %v629
    %662 = vmatprep.subr.mxu0 0.0
    %663 = vmatpush1.msra.mxu0 0.0
    %664 = vmatprep.subr.mxu0 0.0
    %665 = vmatpush1.msra.mxu0 0.0
    %666 = vmatprep.subr.mxu0 0.0
    %667 = vmatpush1.msra.mxu0 0.0
    %668 = vmatprep.subr.mxu0 0.0
    %669 = vmatpush1.msra.mxu0 0.0
    %670 = vmatprep.subr.mxu0 0.0
    %671 = vmatpush1.msra.mxu0 0.0
    %672 = vmatprep.subr.mxu0 0.0
    %673 = vmatpush1.msra.mxu0 0.0
    %674 = vmatprep.subr.mxu0 0.0
    %675 = vmatpush1.msra.mxu0 0.0
    %676 = vmatprep.subr.mxu0 0.0
    %677 = vmatpush1.msra.mxu0 0.0
    %678 = vmatprep.subr.mxu0 0.0
    %679 = vmatpush1.msra.mxu0 0.0
    %680 = vmatprep.subr.mxu0 0.0
    %681 = vmatpush1.msra.mxu0 0.0
    %682 = vmatprep.subr.mxu0 0.0
    %683 = vmatpush1.msra.mxu0 0.0
    %684 = vmatprep.subr.mxu0 0.0
    %685 = vmatpush1.msra.mxu0 0.0
    %686 = vmatprep.subr.mxu0 0.0
    %687 = vmatpush1.msra.mxu0 0.0
    %688 = vmatprep.subr.mxu0 0.0
    %689 = vmatpush1.msra.mxu0 0.0
    %690 = vmatprep.subr.mxu0 0.0
    %691 = vmatpush1.msra.mxu0 0.0
    %692 = vmatprep.subr.mxu0 0.0
    %693 = vmatpush1.msra.mxu0 0.0
    %694 = vmatprep.mubr.f32.mxu0 0.0
    %695 = vmatmul.mubr.f32.gmra.mrb[0].mxu0 %v613
    %v696 = vpop.f32.mrb[0].mxu0
    %v697 = vadd.f32 0.0, %v696
    %v698 = vpop.f32.mrb[0].mxu0
    %699 = vdwg.mxu0
    %v700 = vmul.f32 %v697, 0.001953125
    %v701 = vmul.f32 %v700, %v700
    %v703 = vrot.slane %v701, 7
    %v705 = vsub.f32 %v700, %v703
    %v706 = vld [vmem:[%s4] sm:$0x1]
    %v707 = vadd.f32 %v705, 1e-05
    %v708 = vrsqrt.pop %v707
    %v711 = vunpack.c.l.s4 1966171168
    %v712 = vunpack.c.0.s8 %v711
    %v713 = vlaneseq
    %v714 = vshrl.u32 %v713, 7
    %v715 = vsub.s32 %v712, %v714
    %v716 = vrot.slane %v708, %v715
    %v717 = vcombine.high %v716, %v716
    %v719 = vunpack.c.l.s4 1966171168
    %v720 = vunpack.c.0.s8 %v719
    %v721 = vlaneseq
    %v722 = vshrl.u32 %v721, 7
    %v723 = vsub.s32 %v720, %v722
    %v724 = vrot.slane %v717, %v723
    %v726 = vmul.f32 %v706, %v724
    %v727 = vld [vmem:[%s5] sm:$0x1]
    %v728 = vmul.f32 %v700, %v726
    %v729 = vsub.f32 %v727, %v728
    %v731 = vlaneseq
    %v732 = vshrl.u32 %v731, 7
    %v733 = vsub.s32 0, %v732
    %v734 = vrot.slane %v726, %v733
    %v736 = vmul.f32 %v457, %v734
    %v737 = vmul.f32 %v458, %v734
    %v738 = vmul.f32 %v459, %v734
    %v739 = vmul.f32 %v460, %v734
    %v741 = vlaneseq
    %v742 = vshrl.u32 %v741, 7
    %v743 = vsub.s32 0, %v742
    %v744 = vrot.slane %v729, %v743
    %v746 = vadd.f32 %v736, %v744
    %v747 = vadd.f32 %v737, %v744
    %v748 = vadd.f32 %v738, %v744
    %v749 = vadd.f32 %v739, %v744
    %v750 = vmax.f32 %v746, 0.0
    %v751 = vmax.f32 %v747, 0.0
    %v752 = vmax.f32 %v748, 0.0
    %v753 = vmax.f32 %v749, 0.0
    %754 = vst [vmem:[#allocation2 + $0x1] sm:$0xff] %v750
    %755 = vst [vmem:[#allocation2 + $0x9] sm:$0xff] %v751
    %756 = vst [vmem:[#allocation2 + $0x19] sm:$0xff] %v752
    %757 = vst [vmem:[#allocation2 + $0x21] sm:$0xff] %v753
    %v758 = vld [vmem:[#allocation2] sm:$0xff]
    %v759 = vld [vmem:[#allocation2 + $0x8] sm:$0xff]
    %v760 = vld [vmem:[#allocation2 + $0x18] sm:$0xff]
    %v761 = vld [vmem:[#allocation2 + $0x20] sm:$0xff]
    %v762 = vpack.c.bf16 %v759, %v758
    %v763 = vpack.c.bf16 %v761, %v760
    %v764 = vld [vmem:[#allocation8] sm:$0xf]
    %v765 = vld [vmem:[#allocation8 + $0x4] sm:$0xf]
    %v766 = vld [vmem:[#allocation8 + $0x8] sm:$0xf]
    %v767 = vld [vmem:[#allocation8 + $0xc] sm:$0xf]
    %v768 = vld [vmem:[#allocation8 + $0x10] sm:$0xf]
    %v769 = vld [vmem:[#allocation8 + $0x14] sm:$0xf]
    %v770 = vld [vmem:[#allocation8 + $0x18] sm:$0xf]
    %v771 = vld [vmem:[#allocation8 + $0x1c] sm:$0xf]
    %v772 = vld [vmem:[#allocation8 + $0x20] sm:$0xf]
    %v773 = vld [vmem:[#allocation8 + $0x24] sm:$0xf]
    %v774 = vld [vmem:[#allocation8 + $0x28] sm:$0xf]
    %v775 = vld [vmem:[#allocation8 + $0x2c] sm:$0xf]
    %v776 = vld [vmem:[#allocation8 + $0x30] sm:$0xf]
    %v777 = vld [vmem:[#allocation8 + $0x34] sm:$0xf]
    %v778 = vld [vmem:[#allocation8 + $0x38] sm:$0xf]
    %v779 = vld [vmem:[#allocation8 + $0x3c] sm:$0xf]
    %v780 = vld [vmem:[#allocation2 + $0x1] sm:$0xff]
    %v781 = vld [vmem:[#allocation2 + $0x9] sm:$0xff]
    %v782 = vld [vmem:[#allocation2 + $0x19] sm:$0xff]
    %v783 = vld [vmem:[#allocation2 + $0x21] sm:$0xff]
    %v784 = vpack.c.bf16 %v781, %v780
    %v785 = vpack.c.bf16 %v783, %v782
    %s786 = scalar_lea.vmem [#allocation8], 64
    %v787 = vld [vmem:[%s786] sm:$0xf]
    %v788 = vld [vmem:[%s786 + $0x4] sm:$0xf]
    %v789 = vld [vmem:[%s786 + $0x8] sm:$0xf]
    %v790 = vld [vmem:[%s786 + $0xc] sm:$0xf]
    %v791 = vld [vmem:[%s786 + $0x10] sm:$0xf]
    %v792 = vld [vmem:[%s786 + $0x14] sm:$0xf]
    %v793 = vld [vmem:[%s786 + $0x18] sm:$0xf]
    %v794 = vld [vmem:[%s786 + $0x1c] sm:$0xf]
    %v795 = vld [vmem:[%s786 + $0x20] sm:$0xf]
    %v796 = vld [vmem:[%s786 + $0x24] sm:$0xf]
    %v797 = vld [vmem:[%s786 + $0x28] sm:$0xf]
    %v798 = vld [vmem:[%s786 + $0x2c] sm:$0xf]
    %v799 = vld [vmem:[%s786 + $0x30] sm:$0xf]
    %v800 = vld [vmem:[%s786 + $0x34] sm:$0xf]
    %v801 = vld [vmem:[%s786 + $0x38] sm:$0xf]
    %v802 = vld [vmem:[%s786 + $0x3c] sm:$0xf]
    %v819 = vunpack.c.l.b16 %v787
    %v820 = vunpack.c.l.b16 %v788
    %v821 = vunpack.c.l.b16 %v789
    %v822 = vunpack.c.l.b16 %v790
    %v823 = vunpack.c.l.b16 %v791
    %v824 = vunpack.c.l.b16 %v792
    %v825 = vunpack.c.l.b16 %v793
    %v826 = vunpack.c.l.b16 %v794
    %v827 = vunpack.c.l.b16 %v795
    %v828 = vunpack.c.l.b16 %v796
    %v829 = vunpack.c.l.b16 %v797
    %v830 = vunpack.c.l.b16 %v798
    %v831 = vunpack.c.l.b16 %v799
    %v832 = vunpack.c.l.b16 %v800
    %v833 = vunpack.c.l.b16 %v801
    %v834 = vunpack.c.l.b16 %v802
    %v835 = vpack.c.b16 %v820, %v819
    %v836 = vpack.c.b16 %v822, %v821
    %v837 = vpack.c.b16 %v824, %v823
    %v838 = vpack.c.b16 %v826, %v825
    %v839 = vpack.c.b16 %v828, %v827
    %v840 = vpack.c.b16 %v830, %v829
    %v841 = vpack.c.b16 %v832, %v831
    %v842 = vpack.c.b16 %v834, %v833
    %851 = vmatprep.subr.bf16.mxu0 0
    %852 = vmatpush1.bf16.msra.mxu0 %v835
    %853 = vmatprep.subr.bf16.mxu0 0
    %854 = vmatpush1.bf16.msra.mxu0 %v836
    %855 = vmatprep.subr.bf16.mxu0 0
    %856 = vmatpush1.bf16.msra.mxu0 %v837
    %857 = vmatprep.subr.bf16.mxu0 0
    %858 = vmatpush1.bf16.msra.mxu0 %v838
    %859 = vmatprep.subr.bf16.mxu0 0
    %860 = vmatpush1.bf16.msra.mxu0 %v839
    %861 = vmatprep.subr.bf16.mxu0 0
    %862 = vmatpush1.bf16.msra.mxu0 %v840
    %863 = vmatprep.subr.bf16.mxu0 0
    %864 = vmatpush1.bf16.msra.mxu0 %v841
    %865 = vmatprep.subr.bf16.mxu0 0
    %866 = vmatpush1.bf16.msra.mxu0 %v842
    %867 = vmatprep.subr.bf16.mxu0 0
    %868 = vmatpush1.bf16.msra.mxu0 0
    %869 = vmatprep.subr.bf16.mxu0 0
    %870 = vmatpush1.bf16.msra.mxu0 0
    %871 = vmatprep.subr.bf16.mxu0 0
    %872 = vmatpush1.bf16.msra.mxu0 0
    %873 = vmatprep.subr.bf16.mxu0 0
    %874 = vmatpush1.bf16.msra.mxu0 0
    %875 = vmatprep.subr.bf16.mxu0 0
    %876 = vmatpush1.bf16.msra.mxu0 0
    %877 = vmatprep.subr.bf16.mxu0 0
    %878 = vmatpush1.bf16.msra.mxu0 0
    %879 = vmatprep.subr.bf16.mxu0 0
    %880 = vmatpush1.bf16.msra.mxu0 0
    %881 = vmatprep.subr.bf16.mxu0 0
    %882 = vmatpush1.bf16.msra.mxu0 0
    %883 = vmatprep.mubr.bf16.mxu0 0
    %884 = vmatmul.mubr.bf16.gmra.mrb[0].mxu0 %v784
    %v885 = vpop.f32.mrb[0].mxu0
    %v886 = vadd.f32 0.0, %v885
    %v887 = vpop.f32.mrb[0].mxu0
    %v888 = vpop.f32.mrb[0].mxu0
    %v889 = vadd.f32 0.0, %v888
    %v890 = vpop.f32.mrb[0].mxu0
    %891 = vmatprep.mubr.bf16.mxu0 0
    %892 = vmatmul.mubr.bf16.gmra.mrb[0].mxu0 %v785
    %v893 = vpop.f32.mrb[0].mxu0
    %v894 = vadd.f32 0.0, %v893
    %v895 = vpop.f32.mrb[0].mxu0
    %v896 = vpop.f32.mrb[0].mxu0
    %v897 = vadd.f32 0.0, %v896
    %v898 = vpop.f32.mrb[0].mxu0
    %899 = vdwg.mxu0
    %v916 = vunpack.c.l.b16 %v764
    %v917 = vunpack.c.l.b16 %v765
    %v918 = vunpack.c.l.b16 %v766
    %v919 = vunpack.c.l.b16 %v767
    %v920 = vunpack.c.l.b16 %v768
    %v921 = vunpack.c.l.b16 %v769
    %v922 = vunpack.c.l.b16 %v770
    %v923 = vunpack.c.l.b16 %v771
    %v924 = vunpack.c.l.b16 %v772
    %v925 = vunpack.c.l.b16 %v773
    %v926 = vunpack.c.l.b16 %v774
    %v927 = vunpack.c.l.b16 %v775
    %v928 = vunpack.c.l.b16 %v776
    %v929 = vunpack.c.l.b16 %v777
    %v930 = vunpack.c.l.b16 %v778
    %v931 = vunpack.c.l.b16 %v779
    %v932 = vpack.c.b16 %v917, %v916
    %v933 = vpack.c.b16 %v919, %v918
    %v934 = vpack.c.b16 %v921, %v920
    %v935 = vpack.c.b16 %v923, %v922
    %v936 = vpack.c.b16 %v925, %v924
    %v937 = vpack.c.b16 %v927, %v926
    %v938 = vpack.c.b16 %v929, %v928
    %v939 = vpack.c.b16 %v931, %v930
    %948 = vmatprep.subr.bf16.mxu0 0
    %949 = vmatpush1.bf16.msra.mxu0 %v932
    %950 = vmatprep.subr.bf16.mxu0 0
    %951 = vmatpush1.bf16.msra.mxu0 %v933
    %952 = vmatprep.subr.bf16.mxu0 0
    %953 = vmatpush1.bf16.msra.mxu0 %v934
    %954 = vmatprep.subr.bf16.mxu0 0
    %955 = vmatpush1.bf16.msra.mxu0 %v935
    %956 = vmatprep.subr.bf16.mxu0 0
    %957 = vmatpush1.bf16.msra.mxu0 %v936
    %958 = vmatprep.subr.bf16.mxu0 0
    %959 = vmatpush1.bf16.msra.mxu0 %v937
    %960 = vmatprep.subr.bf16.mxu0 0
    %961 = vmatpush1.bf16.msra.mxu0 %v938
    %962 = vmatprep.subr.bf16.mxu0 0
    %963 = vmatpush1.bf16.msra.mxu0 %v939
    %964 = vmatprep.subr.bf16.mxu0 0
    %965 = vmatpush1.bf16.msra.mxu0 0
    %966 = vmatprep.subr.bf16.mxu0 0
    %967 = vmatpush1.bf16.msra.mxu0 0
    %968 = vmatprep.subr.bf16.mxu0 0
    %969 = vmatpush1.bf16.msra.mxu0 0
    %970 = vmatprep.subr.bf16.mxu0 0
    %971 = vmatpush1.bf16.msra.mxu0 0
    %972 = vmatprep.subr.bf16.mxu0 0
    %973 = vmatpush1.bf16.msra.mxu0 0
    %974 = vmatprep.subr.bf16.mxu0 0
    %975 = vmatpush1.bf16.msra.mxu0 0
    %976 = vmatprep.subr.bf16.mxu0 0
    %977 = vmatpush1.bf16.msra.mxu0 0
    %978 = vmatprep.subr.bf16.mxu0 0
    %979 = vmatpush1.bf16.msra.mxu0 0
    %980 = vmatprep.mubr.bf16.mxu0 0
    %981 = vmatmul.mubr.bf16.gmra.mrb[0].mxu0 %v762
    %v982 = vpop.f32.mrb[0].mxu0
    %v983 = vadd.f32 %v886, %v982
    %v984 = vpop.f32.mrb[0].mxu0
    %v985 = vpop.f32.mrb[0].mxu0
    %v986 = vadd.f32 %v889, %v985
    %v987 = vpop.f32.mrb[0].mxu0
    %988 = vmatprep.mubr.bf16.mxu0 0
    %989 = vmatmul.mubr.bf16.gmra.mrb[0].mxu0 %v763
    %v990 = vpop.f32.mrb[0].mxu0
    %v991 = vadd.f32 %v894, %v990
    %v992 = vpop.f32.mrb[0].mxu0
    %v993 = vpop.f32.mrb[0].mxu0
    %v994 = vadd.f32 %v897, %v993
    %v995 = vpop.f32.mrb[0].mxu0
    %996 = vdwg.mxu0
    %v997 = vld [vmem:[#allocation2 + $0x2] sm:$0xff]
    %v998 = vld [vmem:[#allocation2 + $0xa] sm:$0xff]
    %v999 = vld [vmem:[#allocation2 + $0x1a] sm:$0xff]
    %v1000 = vld [vmem:[#allocation2 + $0x22] sm:$0xff]
    %v1001 = vpack.c.bf16 %v998, %v997
    %v1002 = vpack.c.bf16 %v1000, %v999
    %s1003 = scalar_lea.vmem [#allocation8], 128
    %v1004 = vld [vmem:[%s1003] sm:$0xf]
    %v1005 = vld [vmem:[%s1003 + $0x4] sm:$0xf]
    %v1006 = vld [vmem:[%s1003 + $0x8] sm:$0xf]
    %v1007 = vld [vmem:[%s1003 + $0xc] sm:$0xf]
    %v1008 = vld [vmem:[%s1003 + $0x10] sm:$0xf]
    %v1009 = vld [vmem:[%s1003 + $0x14] sm:$0xf]
    %v1010 = vld [vmem:[%s1003 + $0x18] sm:$0xf]
    %v1011 = vld [vmem:[%s1003 + $0x1c] sm:$0xf]
    %v1012 = vld [vmem:[%s1003 + $0x20] sm:$0xf]
    %v1013 = vld [vmem:[%s1003 + $0x24] sm:$0xf]
    %v1014 = vld [vmem:[%s1003 + $0x28] sm:$0xf]
    %v1015 = vld [vmem:[%s1003 + $0x2c] sm:$0xf]
    %v1016 = vld [vmem:[%s1003 + $0x30] sm:$0xf]
    %v1017 = vld [vmem:[%s1003 + $0x34] sm:$0xf]
    %v1018 = vld [vmem:[%s1003 + $0x38] sm:$0xf]
    %v1019 = vld [vmem:[%s1003 + $0x3c] sm:$0xf]
    %v1036 = vunpack.c.l.b16 %v1004
    %v1037 = vunpack.c.l.b16 %v1005
    %v1038 = vunpack.c.l.b16 %v1006
    %v1039 = vunpack.c.l.b16 %v1007
    %v1040 = vunpack.c.l.b16 %v1008
    %v1041 = vunpack.c.l.b16 %v1009
    %v1042 = vunpack.c.l.b16 %v1010
    %v1043 = vunpack.c.l.b16 %v1011
    %v1044 = vunpack.c.l.b16 %v1012
    %v1045 = vunpack.c.l.b16 %v1013
    %v1046 = vunpack.c.l.b16 %v1014
    %v1047 = vunpack.c.l.b16 %v1015
    %v1048 = vunpack.c.l.b16 %v1016
    %v1049 = vunpack.c.l.b16 %v1017
    %v1050 = vunpack.c.l.b16 %v1018
    %v1051 = vunpack.c.l.b16 %v1019
    %v1052 = vpack.c.b16 %v1037, %v1036
    %v1053 = vpack.c.b16 %v1039, %v1038
    %v1054 = vpack.c.b16 %v1041, %v1040
    %v1055 = vpack.c.b16 %v1043, %v1042
    %v1056 = vpack.c.b16 %v1045, %v1044
    %v1057 = vpack.c.b16 %v1047, %v1046
    %v1058 = vpack.c.b16 %v1049, %v1048
    %v1059 = vpack.c.b16 %v1051, %v1050
    %1068 = vmatprep.subr.bf16.mxu0 0
    %1069 = vmatpush1.bf16.msra.mxu0 %v1052
    %1070 = vmatprep.subr.bf16.mxu0 0
    %1071 = vmatpush1.bf16.msra.mxu0 %v1053
    %1072 = vmatprep.subr.bf16.mxu0 0
    %1073 = vmatpush1.bf16.msra.mxu0 %v1054
    %1074 = vmatprep.subr.bf16.mxu0 0
    %1075 = vmatpush1.bf16.msra.mxu0 %v1055
    %1076 = vmatprep.subr.bf16.mxu0 0
    %1077 = vmatpush1.bf16.msra.mxu0 %v1056
    %1078 = vmatprep.subr.bf16.mxu0 0
    %1079 = vmatpush1.bf16.msra.mxu0 %v1057
    %1080 = vmatprep.subr.bf16.mxu0 0
    %1081 = vmatpush1.bf16.msra.mxu0 %v1058
    %1082 = vmatprep.subr.bf16.mxu0 0
    %1083 = vmatpush1.bf16.msra.mxu0 %v1059
    %1084 = vmatprep.subr.bf16.mxu0 0
    %1085 = vmatpush1.bf16.msra.mxu0 0
    %1086 = vmatprep.subr.bf16.mxu0 0
    %1087 = vmatpush1.bf16.msra.mxu0 0
    %1088 = vmatprep.subr.bf16.mxu0 0
    %1089 = vmatpush1.bf16.msra.mxu0 0
    %1090 = vmatprep.subr.bf16.mxu0 0
    %1091 = vmatpush1.bf16.msra.mxu0 0
    %1092 = vmatprep.subr.bf16.mxu0 0
    %1093 = vmatpush1.bf16.msra.mxu0 0
    %1094 = vmatprep.subr.bf16.mxu0 0
    %1095 = vmatpush1.bf16.msra.mxu0 0
    %1096 = vmatprep.subr.bf16.mxu0 0
    %1097 = vmatpush1.bf16.msra.mxu0 0
    %1098 = vmatprep.subr.bf16.mxu0 0
    %1099 = vmatpush1.bf16.msra.mxu0 0
    %1100 = vmatprep.mubr.bf16.mxu0 0
    %1101 = vmatmul.mubr.bf16.gmra.mrb[0].mxu0 %v1001
    %v1102 = vpop.f32.mrb[0].mxu0
    %v1103 = vadd.f32 0.0, %v1102
    %v1104 = vpop.f32.mrb[0].mxu0
    %v1105 = vpop.f32.mrb[0].mxu0
    %v1106 = vadd.f32 0.0, %v1105
    %v1107 = vpop.f32.mrb[0].mxu0
    %1108 = vmatprep.mubr.bf16.mxu0 0
    %1109 = vmatmul.mubr.bf16.gmra.mrb[0].mxu0 %v1002
    %v1110 = vpop.f32.mrb[0].mxu0
    %v1111 = vadd.f32 0.0, %v1110
    %v1112 = vpop.f32.mrb[0].mxu0
    %v1113 = vpop.f32.mrb[0].mxu0
    %v1114 = vadd.f32 0.0, %v1113
    %v1115 = vpop.f32.mrb[0].mxu0
    %1116 = vdwg.mxu0
    %v1117 = vadd.f32 %v983, %v1103
    %v1118 = vadd.f32 %v986, %v1106
    %v1119 = vadd.f32 %v991, %v1111
    %v1120 = vadd.f32 %v994, %v1114
    %1121 = vmatprep.subr.mxu0 0.0
    %1122 = vmatpush1.msra.mxu0 %v1117
    %1123 = vmatprep.subr.mxu0 0.0
    %1124 = vmatpush1.msra.mxu0 %v1118
    %1125 = vmatprep.subr.mxu0 0.0
    %1126 = vmatpush1.msra.mxu0 %v1119
    %1127 = vmatprep.subr.mxu0 0.0
    %1128 = vmatpush1.msra.mxu0 %v1120
    %1129 = vmatprep.subr.mxu0 0.0
    %1130 = vmatpush1.msra.mxu0 0.0
    %1131 = vmatprep.subr.mxu0 0.0
    %1132 = vmatpush1.msra.mxu0 0.0
    %1133 = vmatprep.subr.mxu0 0.0
    %1134 = vmatpush1.msra.mxu0 0.0
    %1135 = vmatprep.subr.mxu0 0.0
    %1136 = vmatpush1.msra.mxu0 0.0
    %1137 = vmatprep.subr.mxu0 0.0
    %1138 = vmatpush1.msra.mxu0 0.0
    %1139 = vmatprep.subr.mxu0 0.0
    %1140 = vmatpush1.msra.mxu0 0.0
    %1141 = vmatprep.subr.mxu0 0.0
    %1142 = vmatpush1.msra.mxu0 0.0
    %1143 = vmatprep.subr.mxu0 0.0
    %1144 = vmatpush1.msra.mxu0 0.0
    %1145 = vmatprep.subr.mxu0 0.0
    %1146 = vmatpush1.msra.mxu0 0.0
    %1147 = vmatprep.subr.mxu0 0.0
    %1148 = vmatpush1.msra.mxu0 0.0
    %1149 = vmatprep.subr.mxu0 0.0
    %1150 = vmatpush1.msra.mxu0 0.0
    %1151 = vmatprep.subr.mxu0 0.0
    %1152 = vmatpush1.msra.mxu0 0.0
    %1153 = vmatprep.subr.mxu0 0.0
    %1154 = vmatpush1.msra.mxu0 0.0
    %1155 = vmatprep.subr.mxu0 0.0
    %1156 = vmatpush1.msra.mxu0 0.0
    %1157 = vmatprep.subr.mxu0 0.0
    %1158 = vmatpush1.msra.mxu0 0.0
    %1159 = vmatprep.subr.mxu0 0.0
    %1160 = vmatpush1.msra.mxu0 0.0
    %1161 = vmatprep.subr.mxu0 0.0
    %1162 = vmatpush1.msra.mxu0 0.0
    %1163 = vmatprep.subr.mxu0 0.0
    %1164 = vmatpush1.msra.mxu0 0.0
    %1165 = vmatprep.subr.mxu0 0.0
    %1166 = vmatpush1.msra.mxu0 0.0
    %1167 = vmatprep.subr.mxu0 0.0
    %1168 = vmatpush1.msra.mxu0 0.0
    %1169 = vmatprep.subr.mxu0 0.0
    %1170 = vmatpush1.msra.mxu0 0.0
    %1171 = vmatprep.subr.mxu0 0.0
    %1172 = vmatpush1.msra.mxu0 0.0
    %1173 = vmatprep.subr.mxu0 0.0
    %1174 = vmatpush1.msra.mxu0 0.0
    %1175 = vmatprep.subr.mxu0 0.0
    %1176 = vmatpush1.msra.mxu0 0.0
    %1177 = vmatprep.subr.mxu0 0.0
    %1178 = vmatpush1.msra.mxu0 0.0
    %1179 = vmatprep.subr.mxu0 0.0
    %1180 = vmatpush1.msra.mxu0 0.0
    %1181 = vmatprep.subr.mxu0 0.0
    %1182 = vmatpush1.msra.mxu0 0.0
    %1183 = vmatprep.subr.mxu0 0.0
    %1184 = vmatpush1.msra.mxu0 0.0
    %1185 = vmatprep.mubr.f32.mxu0 0.0
    %1186 = vmatmul.mubr.f32.gmra.mrb[0].mxu0 %v463
    %v1187 = vpop.f32.mrb[0].mxu0
    %v1188 = vadd.f32 0.0, %v1187
    %v1189 = vpop.f32.mrb[0].mxu0
    %1190 = vdwg.mxu0
    %v1191 = vmul.f32 %v1117, %v1117
    %v1192 = vmul.f32 %v1118, %v1118
    %v1193 = vmul.f32 %v1119, %v1119
    %v1194 = vmul.f32 %v1120, %v1120
    %1195 = vmatprep.subr.mxu0 0.0
    %1196 = vmatpush1.msra.mxu0 %v1191
    %1197 = vmatprep.subr.mxu0 0.0
    %1198 = vmatpush1.msra.mxu0 %v1192
    %1199 = vmatprep.subr.mxu0 0.0
    %1200 = vmatpush1.msra.mxu0 %v1193
    %1201 = vmatprep.subr.mxu0 0.0
    %1202 = vmatpush1.msra.mxu0 %v1194
    %1203 = vmatprep.subr.mxu0 0.0
    %1204 = vmatpush1.msra.mxu0 0.0
    %1205 = vmatprep.subr.mxu0 0.0
    %1206 = vmatpush1.msra.mxu0 0.0
    %1207 = vmatprep.subr.mxu0 0.0
    %1208 = vmatpush1.msra.mxu0 0.0
    %1209 = vmatprep.subr.mxu0 0.0
    %1210 = vmatpush1.msra.mxu0 0.0
    %1211 = vmatprep.subr.mxu0 0.0
    %1212 = vmatpush1.msra.mxu0 0.0
    %1213 = vmatprep.subr.mxu0 0.0
    %1214 = vmatpush1.msra.mxu0 0.0
    %1215 = vmatprep.subr.mxu0 0.0
    %1216 = vmatpush1.msra.mxu0 0.0
    %1217 = vmatprep.subr.mxu0 0.0
    %1218 = vmatpush1.msra.mxu0 0.0
    %1219 = vmatprep.subr.mxu0 0.0
    %1220 = vmatpush1.msra.mxu0 0.0
    %1221 = vmatprep.subr.mxu0 0.0
    %1222 = vmatpush1.msra.mxu0 0.0
    %1223 = vmatprep.subr.mxu0 0.0
    %1224 = vmatpush1.msra.mxu0 0.0
    %1225 = vmatprep.subr.mxu0 0.0
    %1226 = vmatpush1.msra.mxu0 0.0
    %1227 = vmatprep.subr.mxu0 0.0
    %1228 = vmatpush1.msra.mxu0 0.0
    %1229 = vmatprep.subr.mxu0 0.0
    %1230 = vmatpush1.msra.mxu0 0.0
    %1231 = vmatprep.subr.mxu0 0.0
    %1232 = vmatpush1.msra.mxu0 0.0
    %1233 = vmatprep.subr.mxu0 0.0
    %1234 = vmatpush1.msra.mxu0 0.0
    %1235 = vmatprep.subr.mxu0 0.0
    %1236 = vmatpush1.msra.mxu0 0.0
    %1237 = vmatprep.subr.mxu0 0.0
    %1238 = vmatpush1.msra.mxu0 0.0
    %1239 = vmatprep.subr.mxu0 0.0
    %1240 = vmatpush1.msra.mxu0 0.0
    %1241 = vmatprep.subr.mxu0 0.0
    %1242 = vmatpush1.msra.mxu0 0.0
    %1243 = vmatprep.subr.mxu0 0.0
    %1244 = vmatpush1.msra.mxu0 0.0
    %1245 = vmatprep.subr.mxu0 0.0
    %1246 = vmatpush1.msra.mxu0 0.0
    %1247 = vmatprep.subr.mxu0 0.0
    %1248 = vmatpush1.msra.mxu0 0.0
    %1249 = vmatprep.subr.mxu0 0.0
    %1250 = vmatpush1.msra.mxu0 0.0
    %1251 = vmatprep.subr.mxu0 0.0
    %1252 = vmatpush1.msra.mxu0 0.0
    %1253 = vmatprep.subr.mxu0 0.0
    %1254 = vmatpush1.msra.mxu0 0.0
    %1255 = vmatprep.subr.mxu0 0.0
    %1256 = vmatpush1.msra.mxu0 0.0
    %1257 = vmatprep.subr.mxu0 0.0
    %1258 = vmatpush1.msra.mxu0 0.0
    %1259 = vmatprep.mubr.f32.mxu0 0.0
    %1260 = vmatmul.mubr.f32.gmra.mrb[0].mxu0 %v463
    %v1261 = vpop.f32.mrb[0].mxu0
    %v1262 = vadd.f32 0.0, %v1261
    %v1263 = vpop.f32.mrb[0].mxu0
    %1264 = vdwg.mxu0
    %v1266 = vrot.slane %v1262, 7
    %v1268 = vsel %vm612, %v1188, %v1266
    %v1269 = vld [vmem:[#allocation9] sm:$0xff]
    %v1270 = vld [vmem:[#allocation9 + $0x8] sm:$0xff]
    %v1271 = vld [vmem:[#allocation9 + $0x10] sm:$0xff]
    %v1272 = vld [vmem:[#allocation9 + $0x18] sm:$0xff]
    %v1273 = vld [vmem:[#allocation9 + $0x20] sm:$0xff]
    %v1274 = vld [vmem:[#allocation9 + $0x28] sm:$0xff]
    %v1275 = vld [vmem:[#allocation9 + $0x30] sm:$0xff]
    %v1276 = vld [vmem:[#allocation9 + $0x38] sm:$0xff]
    %v1277 = vld [vmem:[#allocation9 + $0x40] sm:$0xff]
    %v1278 = vld [vmem:[#allocation9 + $0x48] sm:$0xff]
    %v1279 = vld [vmem:[#allocation9 + $0x50] sm:$0xff]
    %v1280 = vld [vmem:[#allocation9 + $0x58] sm:$0xff]
    %v1281 = vld [vmem:[#allocation9 + $0x60] sm:$0xff]
    %v1282 = vld [vmem:[#allocation9 + $0x68] sm:$0xff]
    %v1283 = vld [vmem:[#allocation9 + $0x70] sm:$0xff]
    %v1284 = vld [vmem:[#allocation9 + $0x78] sm:$0xff]
    %1285 = vmatprep.subr.mxu0 0.0
    %1286 = vmatpush1.msra.mxu0 %v1269
    %1287 = vmatprep.subr.mxu0 0.0
    %1288 = vmatpush1.msra.mxu0 %v1270
    %1289 = vmatprep.subr.mxu0 0.0
    %1290 = vmatpush1.msra.mxu0 %v1271
    %1291 = vmatprep.subr.mxu0 0.0
    %1292 = vmatpush1.msra.mxu0 %v1272
    %1293 = vmatprep.subr.mxu0 0.0
    %1294 = vmatpush1.msra.mxu0 %v1273
    %1295 = vmatprep.subr.mxu0 0.0
    %1296 = vmatpush1.msra.mxu0 %v1274
    %1297 = vmatprep.subr.mxu0 0.0
    %1298 = vmatpush1.msra.mxu0 %v1275
    %1299 = vmatprep.subr.mxu0 0.0
    %1300 = vmatpush1.msra.mxu0 %v1276
    %1301 = vmatprep.subr.mxu0 0.0
    %1302 = vmatpush1.msra.mxu0 %v1277
    %1303 = vmatprep.subr.mxu0 0.0
    %1304 = vmatpush1.msra.mxu0 %v1278
    %1305 = vmatprep.subr.mxu0 0.0
    %1306 = vmatpush1.msra.mxu0 %v1279
    %1307 = vmatprep.subr.mxu0 0.0
    %1308 = vmatpush1.msra.mxu0 %v1280
    %1309 = vmatprep.subr.mxu0 0.0
    %1310 = vmatpush1.msra.mxu0 %v1281
    %1311 = vmatprep.subr.mxu0 0.0
    %1312 = vmatpush1.msra.mxu0 %v1282
    %1313 = vmatprep.subr.mxu0 0.0
    %1314 = vmatpush1.msra.mxu0 %v1283
    %1315 = vmatprep.subr.mxu0 0.0
    %1316 = vmatpush1.msra.mxu0 %v1284
    %1317 = vmatprep.subr.mxu0 0.0
    %1318 = vmatpush1.msra.mxu0 0.0
    %1319 = vmatprep.subr.mxu0 0.0
    %1320 = vmatpush1.msra.mxu0 0.0
    %1321 = vmatprep.subr.mxu0 0.0
    %1322 = vmatpush1.msra.mxu0 0.0
    %1323 = vmatprep.subr.mxu0 0.0
    %1324 = vmatpush1.msra.mxu0 0.0
    %1325 = vmatprep.subr.mxu0 0.0
    %1326 = vmatpush1.msra.mxu0 0.0
    %1327 = vmatprep.subr.mxu0 0.0
    %1328 = vmatpush1.msra.mxu0 0.0
    %1329 = vmatprep.subr.mxu0 0.0
    %1330 = vmatpush1.msra.mxu0 0.0
    %1331 = vmatprep.subr.mxu0 0.0
    %1332 = vmatpush1.msra.mxu0 0.0
    %1333 = vmatprep.subr.mxu0 0.0
    %1334 = vmatpush1.msra.mxu0 0.0
    %1335 = vmatprep.subr.mxu0 0.0
    %1336 = vmatpush1.msra.mxu0 0.0
    %1337 = vmatprep.subr.mxu0 0.0
    %1338 = vmatpush1.msra.mxu0 0.0
    %1339 = vmatprep.subr.mxu0 0.0
    %1340 = vmatpush1.msra.mxu0 0.0
    %1341 = vmatprep.subr.mxu0 0.0
    %1342 = vmatpush1.msra.mxu0 0.0
    %1343 = vmatprep.subr.mxu0 0.0
    %1344 = vmatpush1.msra.mxu0 0.0
    %1345 = vmatprep.subr.mxu0 0.0
    %1346 = vmatpush1.msra.mxu0 0.0
    %1347 = vmatprep.subr.mxu0 0.0
    %1348 = vmatpush1.msra.mxu0 0.0
    %1349 = vmatprep.mubr.f32.mxu0 0.0
    %1350 = vmatmul.mubr.f32.gmra.mrb[0].mxu0 %v1268
    %v1351 = vpop.f32.mrb[0].mxu0
    %v1352 = vadd.f32 0.0, %v1351
    %v1353 = vpop.f32.mrb[0].mxu0
    %1354 = vdwg.mxu0
    %v1355 = vmul.f32 %v1352, 0.001953125
    %v1356 = vmul.f32 %v1355, %v1355
    %v1358 = vrot.slane %v1356, 7
    %v1360 = vsub.f32 %v1355, %v1358
    %v1361 = vld [vmem:[%s6] sm:$0x1]
    %v1362 = vadd.f32 %v1360, 1e-05
    %v1363 = vrsqrt.pop %v1362
    %v1366 = vunpack.c.l.s4 1966171168
    %v1367 = vunpack.c.0.s8 %v1366
    %v1368 = vlaneseq
    %v1369 = vshrl.u32 %v1368, 7
    %v1370 = vsub.s32 %v1367, %v1369
    %v1371 = vrot.slane %v1363, %v1370
    %v1372 = vcombine.high %v1371, %v1371
    %v1374 = vunpack.c.l.s4 1966171168
    %v1375 = vunpack.c.0.s8 %v1374
    %v1376 = vlaneseq
    %v1377 = vshrl.u32 %v1376, 7
    %v1378 = vsub.s32 %v1375, %v1377
    %v1379 = vrot.slane %v1372, %v1378
    %v1381 = vmul.f32 %v1361, %v1379
    %v1382 = vld [vmem:[%s7] sm:$0x1]
    %v1383 = vmul.f32 %v1355, %v1381
    %v1384 = vsub.f32 %v1382, %v1383
    %v1385 = vld [vmem:[#allocation3] sm:$0xff]
    %v1386 = vld [vmem:[#allocation3 + $0x8] sm:$0xff]
    %v1387 = vld [vmem:[#allocation3 + $0x10] sm:$0xff]
    %v1388 = vld [vmem:[#allocation3 + $0x18] sm:$0xff]
    %v1390 = vlaneseq
    %v1391 = vshrl.u32 %v1390, 7
    %v1392 = vsub.s32 0, %v1391
    %v1393 = vrot.slane %v1381, %v1392
    %v1395 = vmul.f32 %v1117, %v1393
    %v1396 = vmul.f32 %v1118, %v1393
    %v1397 = vmul.f32 %v1119, %v1393
    %v1398 = vmul.f32 %v1120, %v1393
    %v1400 = vlaneseq
    %v1401 = vshrl.u32 %v1400, 7
    %v1402 = vsub.s32 0, %v1401
    %v1403 = vrot.slane %v1384, %v1402
    %v1405 = vadd.f32 %v1395, %v1403
    %v1406 = vadd.f32 %v1396, %v1403
    %v1407 = vadd.f32 %v1397, %v1403
    %v1408 = vadd.f32 %v1398, %v1403
    %v1409 = vadd.f32 %v1405, %v1385
    %v1410 = vadd.f32 %v1406, %v1386
    %v1411 = vadd.f32 %v1407, %v1387
    %v1412 = vadd.f32 %v1408, %v1388
    %v1413 = vmax.f32 %v1409, 0.0
    %v1414 = vmax.f32 %v1410, 0.0
    %v1415 = vmax.f32 %v1411, 0.0
    %v1416 = vmax.f32 %v1412, 0.0
    %1417 = vst [vmem:[#allocation11] sm:$0xff] %v1413
    %1418 = vst [vmem:[#allocation11 + $0x8] sm:$0xff] %v1414
    %1419 = vst [vmem:[#allocation11 + $0x10] sm:$0xff] %v1415
    %1420 = vst [vmem:[#allocation11 + $0x18] sm:$0xff] %v1416
    // Predicated region
    $region50: #{tpu_custom_call.1} parent=1 // pred_check
      _
    $region51: #{tpu_custom_call.1} parent=1 // pred_check_branch
      %1422 = sbr.rel (0) target = $region53
    $region52: #{tpu_custom_call.1} parent=1 // pred_region
      %s1424 = ssub.s32 512, 512
      %1425 = vsyncadd [#allocation5], %s1424
      %s1426 = sshll.u32 [#allocation11], 4
      %s1427 = int_to_ptr.vmem [resolvable:$true] %s1426
      %1432 = dma.vmem_to_hbm [thread:$0]  %s1427, 512, %s8, [#allocation5], 128, 128, 8
    $region53: #{tpu_custom_call.1} parent=1 // pred_fallthru
      _
    // Predicated region
    $region54: #{tpu_custom_call.1} parent=1 // pred_check
      _
    $region55: #{tpu_custom_call.1} parent=1 // pred_check_branch
      %1434 = sbr.rel (0) target = $region57
    $region56: #{tpu_custom_call.1} parent=1 // pred_region
      %1435 = dma.done [#allocation5], 512
    $region57: #{tpu_custom_call.1} parent=1 // pred_fallthru
      _
    %1436 = vsyncpa [#allocation4], 1
    %1437 = vsyncpa [#allocation7], 1
    %1438 = vsyncpa [#allocation10], 1
    %1439 = vsyncpa [#allocation5], 1

</llo_original>
